<compile_context>
chip_gen: v7x
topology: tpu7x:2x2x1
jax: 0.10.0
libtpu: 0.0.40
codegen_flags: <defaults>
</compile_context>

<pallas_src>
import functools

import jax
import jax.numpy as jnp
from jax.experimental import pallas as pl
from jax.experimental.pallas import tpu as pltpu


def _sam_kernel(params_ref, pos_ref, x_ref, out_ref, *, C, H, W, K, P):
    # params_ref : SMEM (2*K*K + 1,) f32 -- BN-folded conv weights (1/C folded
    #              into the mean channel) followed by the folded BN bias.
    # pos_ref    : VMEM (2, H*W) int32   -- [flat index k, column index k % W]
    # x_ref      : VMEM (1, C, H*W)
    # out_ref    : VMEM (1, C, H*W)
    HW = H * W

    # --- fused channel pooling: running max + running sum in ONE pass over C ---
    x0 = x_ref[0, pl.ds(0, 1), :].astype(jnp.float32)           # (1, HW)

    def pool_body(c, carry):
        m, s = carry
        xc = x_ref[0, pl.ds(c, 1), :].astype(jnp.float32)
        return jnp.maximum(m, xc), s + xc

    ch_max, ch_sum = jax.lax.fori_loop(1, C, pool_body, (x0, x0), unroll=True)
    # (1/C of the mean pool is pre-folded into the channel-1 conv weights.)

    # --- 7x7 'same' conv (2 -> 1 channel) on the flattened maps ---------------
    #   out = sum_dy rowshift_dy( sum_dx w[dy, dx] * colshift_dx(in) )
    # colshift: lane roll by dx, masked where the roll crosses a row of width W.
    # rowshift: lane roll by dy*W, masked at the top/bottom halo.
    flat_idx = pos_ref[pl.ds(0, 1), :]                          # (1, HW) int32
    col_idx = pos_ref[pl.ds(1, 1), :]                           # (1, HW) int32

    def shift(a, d, idx, bound):
        # b[k] = a[k + d], zero-filled where (idx + d) leaves [0, bound).
        if d == 0:
            return a
        r = pltpu.roll(a, shift=(-d) % HW, axis=1)              # XLU, not VMEM
        if d > 0:
            return jnp.where(idx < bound - d, r, 0.0)
        return jnp.where(idx >= -d, r, 0.0)

    acc = jnp.zeros((1, HW), jnp.float32)
    for c, pooled in enumerate((ch_max, ch_sum)):
        cols = [shift(pooled, dx, col_idx, W) for dx in range(-P, P + 1)]
        for dy in range(-P, P + 1):
            base = c * K * K + (dy + P) * K
            g = params_ref[base] * cols[0]
            for kx in range(1, K):
                g = g + params_ref[base + kx] * cols[kx]
            acc = acc + shift(g, dy * W, flat_idx, HW)

    # --- folded BatchNorm bias, sigmoid gate, rescale the input ---------------
    bias = params_ref[2 * K * K]
    scale = jax.nn.sigmoid(acc + bias)                          # (1, HW)
    # TODO(synk): for production-sized C*H*W, tile the gate (and the input
    # block, with a 2P-row conv halo) instead of materializing the whole
    # (C, H*W) block in vregs, and keep bf16 inputs in bf16 on v6e/v7x.
    out_ref[0] = (scale * x_ref[0].astype(jnp.float32)).astype(out_ref.dtype)


def sam_forward(x, conv_w, bn_params, *, eps=1e-3, kernel_size=7):
    """x: (B, C, H, W); conv_w: (1, 2, K, K); bn_params: (4,)=[gamma,beta,mean,var]."""
    B, C, H, W = x.shape
    K = kernel_size
    P = (K - 1) // 2
    HW = H * W

    # Fold eval-mode BatchNorm (scale/shift) and the 1/C of the mean pool into
    # the conv weights + a single scalar bias (done once, on the host).
    gamma = bn_params[0].astype(jnp.float32)
    beta = bn_params[1].astype(jnp.float32)
    mean = bn_params[2].astype(jnp.float32)
    var = bn_params[3].astype(jnp.float32)
    bn_scale = gamma * jax.lax.rsqrt(var + eps)
    bias = beta - mean * bn_scale
    w = conv_w.reshape(2, K, K).astype(jnp.float32) * bn_scale
    w = w.at[1].multiply(1.0 / C)                      # mean channel -> sum channel
    params = jnp.concatenate([w.reshape(-1), bias.reshape(1)])   # (2*K*K + 1,)

    # Flat / column index vectors used by the in-kernel conv shift masks.
    flat_ids = jnp.arange(HW, dtype=jnp.int32)
    pos = jnp.stack([flat_ids, flat_ids % W])          # (2, HW) int32

    x_flat = x.reshape(B, C, HW)                       # lane-dense spatial axis
    kernel = functools.partial(_sam_kernel, C=C, H=H, W=W, K=K, P=P)
    out_flat = pl.pallas_call(
        kernel,
        out_shape=jax.ShapeDtypeStruct((B, C, HW), x.dtype),
        grid=(B,),
        in_specs=[
            pl.BlockSpec(memory_space=pltpu.MemorySpace.SMEM),   # folded conv+BN params
            pl.BlockSpec((2, HW), lambda b: (0, 0)),             # position indices
            pl.BlockSpec((1, C, HW), lambda b: (b, 0, 0)),       # x, one batch element
        ],
        out_specs=pl.BlockSpec((1, C, HW), lambda b: (b, 0, 0)),
        # Batches are independent -> shard the grid across both v7x TensorCores.
        # (For very large C*H*W, add an H-tile grid axis with a 2P-row halo so
        #  the double-buffered block fits v7x's 64 MiB VMEM.)
        compiler_params=pltpu.CompilerParams(dimension_semantics=("parallel",)),
    )(params, pos, x_flat)
    return out_flat.reshape(B, C, H, W)


def sam_reference(x, conv_w, bn_params, *, eps=1e-3, kernel_size=7):
    P = (kernel_size - 1) // 2
    ch_max = jnp.max(x, axis=1, keepdims=True)
    ch_mean = jnp.mean(x, axis=1, keepdims=True)
    pooled = jnp.concatenate([ch_max, ch_mean], axis=1)
    out = jax.lax.conv_general_dilated(
        pooled, conv_w, window_strides=(1, 1), padding=[(P, P), (P, P)],
        dimension_numbers=("NCHW", "OIHW", "NCHW"),
        precision=jax.lax.Precision.HIGHEST)
    gamma, beta, mean, var = bn_params
    out = (out - mean) * jax.lax.rsqrt(var + eps) * gamma + beta
    return jax.nn.sigmoid(out) * x


if __name__ == "__main__":
    key = jax.random.PRNGKey(0)
    kx, kw = jax.random.split(key)

    B, C, H, W = 2, 4, 16, 16
    K = 7
    x = jax.random.normal(kx, (B, C, H, W), dtype=jnp.float32)

    # Deterministic Conv2d(2, 1, 7, bias=False) init (kaiming-uniform-like bound).
    fan_in = 2 * K * K
    bound = float(1.0 / (fan_in ** 0.5))
    conv_w = jax.random.uniform(kw, (1, 2, K, K), jnp.float32, -bound, bound)

    # BatchNorm2d(1) fresh params: gamma=1, beta=0, running_mean=0, running_var=1.
    bn_params = jnp.array([1.0, 0.0, 0.0, 1.0], jnp.float32)

    out = sam_forward(x, conv_w, bn_params, eps=1e-3, kernel_size=K)
    out = jax.block_until_ready(out)

    ref = sam_reference(x, conv_w, bn_params, eps=1e-3, kernel_size=K)
    assert out.shape == x.shape, (out.shape, x.shape)
    max_err = float(jnp.max(jnp.abs(out - ref)))
    assert jnp.allclose(out, ref, atol=2e-5, rtol=1e-5), max_err

    print("KERNEL_OK")
</pallas_src>

<mosaic_0001>
module attributes {stable_mosaic.version = 11 : i64} {
  func.func @_sam_kernel(%arg0: i32, %arg1: memref<99xf32, #tpu.memory_space<smem>>, %arg2: memref<2x256xi32, #tpu.memory_space<vmem>>, %arg3: memref<1x4x256xf32, #tpu.memory_space<vmem>>, %arg4: memref<1x4x256xf32, #tpu.memory_space<vmem>>) attributes {dimension_semantics = [#tpu.dimension_semantics<parallel>], iteration_bounds = array<i64: 2>, scalar_prefetch = 0 : i64, scratch_operands = 0 : i64, tpu.core_type = #tpu.core_type<tc>, window_params = [{transform_indices = @transform_0, window_bounds = array<i64: 99>}, {pipeline_mode = #tpu.pipeline_mode<synchronous>, transform_indices = @transform_1, window_bounds = array<i64: 2, 256>}, {transform_indices = @transform_2, window_bounds = array<i64: 1, 4, 256>}, {transform_indices = @transform_3, window_bounds = array<i64: 1, 4, 256>}]} {
    %c0 = arith.constant 0 : index
    %c0_0 = arith.constant 0 : index
    %c0_1 = arith.constant 0 : index
    %0 = vector.load %arg3[%c0, %c0_0, %c0_1] : memref<1x4x256xf32, #tpu.memory_space<vmem>>, vector<1x1x256xf32>
    %1 = vector.shape_cast %0 : vector<1x1x256xf32> to vector<1x256xf32>
    %c1_i32 = arith.constant 1 : i32
    %c0_2 = arith.constant 0 : index
    %2 = arith.index_cast %c1_i32 : i32 to index
    %c0_3 = arith.constant 0 : index
    %3 = vector.load %arg3[%c0_2, %2, %c0_3] : memref<1x4x256xf32, #tpu.memory_space<vmem>>, vector<1x1x256xf32>
    %4 = vector.shape_cast %3 : vector<1x1x256xf32> to vector<1x256xf32>
    %5 = arith.maximumf %1, %4 : vector<1x256xf32>
    %6 = arith.addf %1, %4 : vector<1x256xf32>
    %c2_i32 = arith.constant 2 : i32
    %c0_4 = arith.constant 0 : index
    %7 = arith.index_cast %c2_i32 : i32 to index
    %c0_5 = arith.constant 0 : index
    %8 = vector.load %arg3[%c0_4, %7, %c0_5] : memref<1x4x256xf32, #tpu.memory_space<vmem>>, vector<1x1x256xf32>
    %9 = vector.shape_cast %8 : vector<1x1x256xf32> to vector<1x256xf32>
    %10 = arith.maximumf %5, %9 : vector<1x256xf32>
    %11 = arith.addf %6, %9 : vector<1x256xf32>
    %c3_i32 = arith.constant 3 : i32
    %c0_6 = arith.constant 0 : index
    %12 = arith.index_cast %c3_i32 : i32 to index
    %c0_7 = arith.constant 0 : index
    %13 = vector.load %arg3[%c0_6, %12, %c0_7] : memref<1x4x256xf32, #tpu.memory_space<vmem>>, vector<1x1x256xf32>
    %14 = vector.shape_cast %13 : vector<1x1x256xf32> to vector<1x256xf32>
    %15 = arith.maximumf %10, %14 : vector<1x256xf32>
    %16 = arith.addf %11, %14 : vector<1x256xf32>
    %c3_i32_8 = arith.constant 3 : i32
    %c0_9 = arith.constant 0 : index
    %c0_10 = arith.constant 0 : index
    %17 = vector.load %arg2[%c0_9, %c0_10] : memref<2x256xi32, #tpu.memory_space<vmem>>, vector<1x256xi32>
    %c1 = arith.constant 1 : index
    %c0_11 = arith.constant 0 : index
    %18 = vector.load %arg2[%c1, %c0_11] : memref<2x256xi32, #tpu.memory_space<vmem>>, vector<1x256xi32>
    %cst = arith.constant 0.000000e+00 : f32
    %19 = vector.broadcast %cst : f32 to vector<1x256xf32>
    %c3_i32_12 = arith.constant 3 : i32
    %20 = tpu.dynamic_rotate %15 by %c3_i32_12 dim 1 : vector<1x256xf32>, i32 -> vector<1x256xf32>
    %c3_i32_13 = arith.constant 3 : i32
    %21 = vector.broadcast %c3_i32_13 : i32 to vector<1x256xi32>
    %22 = arith.cmpi sge, %18, %21 : vector<1x256xi32>
    %cst_14 = arith.constant 0.000000e+00 : f32
    %23 = vector.broadcast %cst_14 : f32 to vector<1x256xf32>
    %24 = arith.select %22, %20, %23 : vector<1x256xi1>, vector<1x256xf32>
    %c2_i32_15 = arith.constant 2 : i32
    %25 = tpu.dynamic_rotate %15 by %c2_i32_15 dim 1 : vector<1x256xf32>, i32 -> vector<1x256xf32>
    %c2_i32_16 = arith.constant 2 : i32
    %26 = vector.broadcast %c2_i32_16 : i32 to vector<1x256xi32>
    %27 = arith.cmpi sge, %18, %26 : vector<1x256xi32>
    %cst_17 = arith.constant 0.000000e+00 : f32
    %28 = vector.broadcast %cst_17 : f32 to vector<1x256xf32>
    %29 = arith.select %27, %25, %28 : vector<1x256xi1>, vector<1x256xf32>
    %c1_i32_18 = arith.constant 1 : i32
    %30 = tpu.dynamic_rotate %15 by %c1_i32_18 dim 1 : vector<1x256xf32>, i32 -> vector<1x256xf32>
    %c1_i32_19 = arith.constant 1 : i32
    %31 = vector.broadcast %c1_i32_19 : i32 to vector<1x256xi32>
    %32 = arith.cmpi sge, %18, %31 : vector<1x256xi32>
    %cst_20 = arith.constant 0.000000e+00 : f32
    %33 = vector.broadcast %cst_20 : f32 to vector<1x256xf32>
    %34 = arith.select %32, %30, %33 : vector<1x256xi1>, vector<1x256xf32>
    %c255_i32 = arith.constant 255 : i32
    %35 = tpu.dynamic_rotate %15 by %c255_i32 dim 1 : vector<1x256xf32>, i32 -> vector<1x256xf32>
    %c15_i32 = arith.constant 15 : i32
    %36 = vector.broadcast %c15_i32 : i32 to vector<1x256xi32>
    %37 = arith.cmpi slt, %18, %36 : vector<1x256xi32>
    %cst_21 = arith.constant 0.000000e+00 : f32
    %38 = vector.broadcast %cst_21 : f32 to vector<1x256xf32>
    %39 = arith.select %37, %35, %38 : vector<1x256xi1>, vector<1x256xf32>
    %c254_i32 = arith.constant 254 : i32
    %40 = tpu.dynamic_rotate %15 by %c254_i32 dim 1 : vector<1x256xf32>, i32 -> vector<1x256xf32>
    %c14_i32 = arith.constant 14 : i32
    %41 = vector.broadcast %c14_i32 : i32 to vector<1x256xi32>
    %42 = arith.cmpi slt, %18, %41 : vector<1x256xi32>
    %cst_22 = arith.constant 0.000000e+00 : f32
    %43 = vector.broadcast %cst_22 : f32 to vector<1x256xf32>
    %44 = arith.select %42, %40, %43 : vector<1x256xi1>, vector<1x256xf32>
    %c253_i32 = arith.constant 253 : i32
    %45 = tpu.dynamic_rotate %15 by %c253_i32 dim 1 : vector<1x256xf32>, i32 -> vector<1x256xf32>
    %c13_i32 = arith.constant 13 : i32
    %46 = vector.broadcast %c13_i32 : i32 to vector<1x256xi32>
    %47 = arith.cmpi slt, %18, %46 : vector<1x256xi32>
    %cst_23 = arith.constant 0.000000e+00 : f32
    %48 = vector.broadcast %cst_23 : f32 to vector<1x256xf32>
    %49 = arith.select %47, %45, %48 : vector<1x256xi1>, vector<1x256xf32>
    %c0_24 = arith.constant 0 : index
    %50 = memref.load %arg1[%c0_24] : memref<99xf32, #tpu.memory_space<smem>>
    %51 = vector.broadcast %50 : f32 to vector<1x256xf32>
    %52 = arith.mulf %51, %24 : vector<1x256xf32>
    %c1_25 = arith.constant 1 : index
    %53 = memref.load %arg1[%c1_25] : memref<99xf32, #tpu.memory_space<smem>>
    %54 = vector.broadcast %53 : f32 to vector<1x256xf32>
    %55 = arith.mulf %54, %29 : vector<1x256xf32>
    %56 = arith.addf %52, %55 : vector<1x256xf32>
    %c2 = arith.constant 2 : index
    %57 = memref.load %arg1[%c2] : memref<99xf32, #tpu.memory_space<smem>>
    %58 = vector.broadcast %57 : f32 to vector<1x256xf32>
    %59 = arith.mulf %58, %34 : vector<1x256xf32>
    %60 = arith.addf %56, %59 : vector<1x256xf32>
    %c3 = arith.constant 3 : index
    %61 = memref.load %arg1[%c3] : memref<99xf32, #tpu.memory_space<smem>>
    %62 = vector.broadcast %61 : f32 to vector<1x256xf32>
    %63 = arith.mulf %62, %15 : vector<1x256xf32>
    %64 = arith.addf %60, %63 : vector<1x256xf32>
    %c4 = arith.constant 4 : index
    %65 = memref.load %arg1[%c4] : memref<99xf32, #tpu.memory_space<smem>>
    %66 = vector.broadcast %65 : f32 to vector<1x256xf32>
    %67 = arith.mulf %66, %39 : vector<1x256xf32>
    %68 = arith.addf %64, %67 : vector<1x256xf32>
    %c5 = arith.constant 5 : index
    %69 = memref.load %arg1[%c5] : memref<99xf32, #tpu.memory_space<smem>>
    %70 = vector.broadcast %69 : f32 to vector<1x256xf32>
    %71 = arith.mulf %70, %44 : vector<1x256xf32>
    %72 = arith.addf %68, %71 : vector<1x256xf32>
    %c6 = arith.constant 6 : index
    %73 = memref.load %arg1[%c6] : memref<99xf32, #tpu.memory_space<smem>>
    %74 = vector.broadcast %73 : f32 to vector<1x256xf32>
    %75 = arith.mulf %74, %49 : vector<1x256xf32>
    %76 = arith.addf %72, %75 : vector<1x256xf32>
    %c48_i32 = arith.constant 48 : i32
    %77 = tpu.dynamic_rotate %76 by %c48_i32 dim 1 : vector<1x256xf32>, i32 -> vector<1x256xf32>
    %c48_i32_26 = arith.constant 48 : i32
    %78 = vector.broadcast %c48_i32_26 : i32 to vector<1x256xi32>
    %79 = arith.cmpi sge, %17, %78 : vector<1x256xi32>
    %cst_27 = arith.constant 0.000000e+00 : f32
    %80 = vector.broadcast %cst_27 : f32 to vector<1x256xf32>
    %81 = arith.select %79, %77, %80 : vector<1x256xi1>, vector<1x256xf32>
    %82 = arith.addf %19, %81 : vector<1x256xf32>
    %c7 = arith.constant 7 : index
    %83 = memref.load %arg1[%c7] : memref<99xf32, #tpu.memory_space<smem>>
    %84 = vector.broadcast %83 : f32 to vector<1x256xf32>
    %85 = arith.mulf %84, %24 : vector<1x256xf32>
    %c8 = arith.constant 8 : index
    %86 = memref.load %arg1[%c8] : memref<99xf32, #tpu.memory_space<smem>>
    %87 = vector.broadcast %86 : f32 to vector<1x256xf32>
    %88 = arith.mulf %87, %29 : vector<1x256xf32>
    %89 = arith.addf %85, %88 : vector<1x256xf32>
    %c9 = arith.constant 9 : index
    %90 = memref.load %arg1[%c9] : memref<99xf32, #tpu.memory_space<smem>>
    %91 = vector.broadcast %90 : f32 to vector<1x256xf32>
    %92 = arith.mulf %91, %34 : vector<1x256xf32>
    %93 = arith.addf %89, %92 : vector<1x256xf32>
    %c10 = arith.constant 10 : index
    %94 = memref.load %arg1[%c10] : memref<99xf32, #tpu.memory_space<smem>>
    %95 = vector.broadcast %94 : f32 to vector<1x256xf32>
    %96 = arith.mulf %95, %15 : vector<1x256xf32>
    %97 = arith.addf %93, %96 : vector<1x256xf32>
    %c11 = arith.constant 11 : index
    %98 = memref.load %arg1[%c11] : memref<99xf32, #tpu.memory_space<smem>>
    %99 = vector.broadcast %98 : f32 to vector<1x256xf32>
    %100 = arith.mulf %99, %39 : vector<1x256xf32>
    %101 = arith.addf %97, %100 : vector<1x256xf32>
    %c12 = arith.constant 12 : index
    %102 = memref.load %arg1[%c12] : memref<99xf32, #tpu.memory_space<smem>>
    %103 = vector.broadcast %102 : f32 to vector<1x256xf32>
    %104 = arith.mulf %103, %44 : vector<1x256xf32>
    %105 = arith.addf %101, %104 : vector<1x256xf32>
    %c13 = arith.constant 13 : index
    %106 = memref.load %arg1[%c13] : memref<99xf32, #tpu.memory_space<smem>>
    %107 = vector.broadcast %106 : f32 to vector<1x256xf32>
    %108 = arith.mulf %107, %49 : vector<1x256xf32>
    %109 = arith.addf %105, %108 : vector<1x256xf32>
    %c32_i32 = arith.constant 32 : i32
    %110 = tpu.dynamic_rotate %109 by %c32_i32 dim 1 : vector<1x256xf32>, i32 -> vector<1x256xf32>
    %c32_i32_28 = arith.constant 32 : i32
    %111 = vector.broadcast %c32_i32_28 : i32 to vector<1x256xi32>
    %112 = arith.cmpi sge, %17, %111 : vector<1x256xi32>
    %cst_29 = arith.constant 0.000000e+00 : f32
    %113 = vector.broadcast %cst_29 : f32 to vector<1x256xf32>
    %114 = arith.select %112, %110, %113 : vector<1x256xi1>, vector<1x256xf32>
    %115 = arith.addf %82, %114 : vector<1x256xf32>
    %c14 = arith.constant 14 : index
    %116 = memref.load %arg1[%c14] : memref<99xf32, #tpu.memory_space<smem>>
    %117 = vector.broadcast %116 : f32 to vector<1x256xf32>
    %118 = arith.mulf %117, %24 : vector<1x256xf32>
    %c15 = arith.constant 15 : index
    %119 = memref.load %arg1[%c15] : memref<99xf32, #tpu.memory_space<smem>>
    %120 = vector.broadcast %119 : f32 to vector<1x256xf32>
    %121 = arith.mulf %120, %29 : vector<1x256xf32>
    %122 = arith.addf %118, %121 : vector<1x256xf32>
    %c16 = arith.constant 16 : index
    %123 = memref.load %arg1[%c16] : memref<99xf32, #tpu.memory_space<smem>>
    %124 = vector.broadcast %123 : f32 to vector<1x256xf32>
    %125 = arith.mulf %124, %34 : vector<1x256xf32>
    %126 = arith.addf %122, %125 : vector<1x256xf32>
    %c17 = arith.constant 17 : index
    %127 = memref.load %arg1[%c17] : memref<99xf32, #tpu.memory_space<smem>>
    %128 = vector.broadcast %127 : f32 to vector<1x256xf32>
    %129 = arith.mulf %128, %15 : vector<1x256xf32>
    %130 = arith.addf %126, %129 : vector<1x256xf32>
    %c18 = arith.constant 18 : index
    %131 = memref.load %arg1[%c18] : memref<99xf32, #tpu.memory_space<smem>>
    %132 = vector.broadcast %131 : f32 to vector<1x256xf32>
    %133 = arith.mulf %132, %39 : vector<1x256xf32>
    %134 = arith.addf %130, %133 : vector<1x256xf32>
    %c19 = arith.constant 19 : index
    %135 = memref.load %arg1[%c19] : memref<99xf32, #tpu.memory_space<smem>>
    %136 = vector.broadcast %135 : f32 to vector<1x256xf32>
    %137 = arith.mulf %136, %44 : vector<1x256xf32>
    %138 = arith.addf %134, %137 : vector<1x256xf32>
    %c20 = arith.constant 20 : index
    %139 = memref.load %arg1[%c20] : memref<99xf32, #tpu.memory_space<smem>>
    %140 = vector.broadcast %139 : f32 to vector<1x256xf32>
    %141 = arith.mulf %140, %49 : vector<1x256xf32>
    %142 = arith.addf %138, %141 : vector<1x256xf32>
    %c16_i32 = arith.constant 16 : i32
    %143 = tpu.dynamic_rotate %142 by %c16_i32 dim 1 : vector<1x256xf32>, i32 -> vector<1x256xf32>
    %c16_i32_30 = arith.constant 16 : i32
    %144 = vector.broadcast %c16_i32_30 : i32 to vector<1x256xi32>
    %145 = arith.cmpi sge, %17, %144 : vector<1x256xi32>
    %cst_31 = arith.constant 0.000000e+00 : f32
    %146 = vector.broadcast %cst_31 : f32 to vector<1x256xf32>
    %147 = arith.select %145, %143, %146 : vector<1x256xi1>, vector<1x256xf32>
    %148 = arith.addf %115, %147 : vector<1x256xf32>
    %c21 = arith.constant 21 : index
    %149 = memref.load %arg1[%c21] : memref<99xf32, #tpu.memory_space<smem>>
    %150 = vector.broadcast %149 : f32 to vector<1x256xf32>
    %151 = arith.mulf %150, %24 : vector<1x256xf32>
    %c22 = arith.constant 22 : index
    %152 = memref.load %arg1[%c22] : memref<99xf32, #tpu.memory_space<smem>>
    %153 = vector.broadcast %152 : f32 to vector<1x256xf32>
    %154 = arith.mulf %153, %29 : vector<1x256xf32>
    %155 = arith.addf %151, %154 : vector<1x256xf32>
    %c23 = arith.constant 23 : index
    %156 = memref.load %arg1[%c23] : memref<99xf32, #tpu.memory_space<smem>>
    %157 = vector.broadcast %156 : f32 to vector<1x256xf32>
    %158 = arith.mulf %157, %34 : vector<1x256xf32>
    %159 = arith.addf %155, %158 : vector<1x256xf32>
    %c24 = arith.constant 24 : index
    %160 = memref.load %arg1[%c24] : memref<99xf32, #tpu.memory_space<smem>>
    %161 = vector.broadcast %160 : f32 to vector<1x256xf32>
    %162 = arith.mulf %161, %15 : vector<1x256xf32>
    %163 = arith.addf %159, %162 : vector<1x256xf32>
    %c25 = arith.constant 25 : index
    %164 = memref.load %arg1[%c25] : memref<99xf32, #tpu.memory_space<smem>>
    %165 = vector.broadcast %164 : f32 to vector<1x256xf32>
    %166 = arith.mulf %165, %39 : vector<1x256xf32>
    %167 = arith.addf %163, %166 : vector<1x256xf32>
    %c26 = arith.constant 26 : index
    %168 = memref.load %arg1[%c26] : memref<99xf32, #tpu.memory_space<smem>>
    %169 = vector.broadcast %168 : f32 to vector<1x256xf32>
    %170 = arith.mulf %169, %44 : vector<1x256xf32>
    %171 = arith.addf %167, %170 : vector<1x256xf32>
    %c27 = arith.constant 27 : index
    %172 = memref.load %arg1[%c27] : memref<99xf32, #tpu.memory_space<smem>>
    %173 = vector.broadcast %172 : f32 to vector<1x256xf32>
    %174 = arith.mulf %173, %49 : vector<1x256xf32>
    %175 = arith.addf %171, %174 : vector<1x256xf32>
    %176 = arith.addf %148, %175 : vector<1x256xf32>
    %c28 = arith.constant 28 : index
    %177 = memref.load %arg1[%c28] : memref<99xf32, #tpu.memory_space<smem>>
    %178 = vector.broadcast %177 : f32 to vector<1x256xf32>
    %179 = arith.mulf %178, %24 : vector<1x256xf32>
    %c29 = arith.constant 29 : index
    %180 = memref.load %arg1[%c29] : memref<99xf32, #tpu.memory_space<smem>>
    %181 = vector.broadcast %180 : f32 to vector<1x256xf32>
    %182 = arith.mulf %181, %29 : vector<1x256xf32>
    %183 = arith.addf %179, %182 : vector<1x256xf32>
    %c30 = arith.constant 30 : index
    %184 = memref.load %arg1[%c30] : memref<99xf32, #tpu.memory_space<smem>>
    %185 = vector.broadcast %184 : f32 to vector<1x256xf32>
    %186 = arith.mulf %185, %34 : vector<1x256xf32>
    %187 = arith.addf %183, %186 : vector<1x256xf32>
    %c31 = arith.constant 31 : index
    %188 = memref.load %arg1[%c31] : memref<99xf32, #tpu.memory_space<smem>>
    %189 = vector.broadcast %188 : f32 to vector<1x256xf32>
    %190 = arith.mulf %189, %15 : vector<1x256xf32>
    %191 = arith.addf %187, %190 : vector<1x256xf32>
    %c32 = arith.constant 32 : index
    %192 = memref.load %arg1[%c32] : memref<99xf32, #tpu.memory_space<smem>>
    %193 = vector.broadcast %192 : f32 to vector<1x256xf32>
    %194 = arith.mulf %193, %39 : vector<1x256xf32>
    %195 = arith.addf %191, %194 : vector<1x256xf32>
    %c33 = arith.constant 33 : index
    %196 = memref.load %arg1[%c33] : memref<99xf32, #tpu.memory_space<smem>>
    %197 = vector.broadcast %196 : f32 to vector<1x256xf32>
    %198 = arith.mulf %197, %44 : vector<1x256xf32>
    %199 = arith.addf %195, %198 : vector<1x256xf32>
    %c34 = arith.constant 34 : index
    %200 = memref.load %arg1[%c34] : memref<99xf32, #tpu.memory_space<smem>>
    %201 = vector.broadcast %200 : f32 to vector<1x256xf32>
    %202 = arith.mulf %201, %49 : vector<1x256xf32>
    %203 = arith.addf %199, %202 : vector<1x256xf32>
    %c240_i32 = arith.constant 240 : i32
    %204 = tpu.dynamic_rotate %203 by %c240_i32 dim 1 : vector<1x256xf32>, i32 -> vector<1x256xf32>
    %c240_i32_32 = arith.constant 240 : i32
    %205 = vector.broadcast %c240_i32_32 : i32 to vector<1x256xi32>
    %206 = arith.cmpi slt, %17, %205 : vector<1x256xi32>
    %cst_33 = arith.constant 0.000000e+00 : f32
    %207 = vector.broadcast %cst_33 : f32 to vector<1x256xf32>
    %208 = arith.select %206, %204, %207 : vector<1x256xi1>, vector<1x256xf32>
    %209 = arith.addf %176, %208 : vector<1x256xf32>
    %c35 = arith.constant 35 : index
    %210 = memref.load %arg1[%c35] : memref<99xf32, #tpu.memory_space<smem>>
    %211 = vector.broadcast %210 : f32 to vector<1x256xf32>
    %212 = arith.mulf %211, %24 : vector<1x256xf32>
    %c36 = arith.constant 36 : index
    %213 = memref.load %arg1[%c36] : memref<99xf32, #tpu.memory_space<smem>>
    %214 = vector.broadcast %213 : f32 to vector<1x256xf32>
    %215 = arith.mulf %214, %29 : vector<1x256xf32>
    %216 = arith.addf %212, %215 : vector<1x256xf32>
    %c37 = arith.constant 37 : index
    %217 = memref.load %arg1[%c37] : memref<99xf32, #tpu.memory_space<smem>>
    %218 = vector.broadcast %217 : f32 to vector<1x256xf32>
    %219 = arith.mulf %218, %34 : vector<1x256xf32>
    %220 = arith.addf %216, %219 : vector<1x256xf32>
    %c38 = arith.constant 38 : index
    %221 = memref.load %arg1[%c38] : memref<99xf32, #tpu.memory_space<smem>>
    %222 = vector.broadcast %221 : f32 to vector<1x256xf32>
    %223 = arith.mulf %222, %15 : vector<1x256xf32>
    %224 = arith.addf %220, %223 : vector<1x256xf32>
    %c39 = arith.constant 39 : index
    %225 = memref.load %arg1[%c39] : memref<99xf32, #tpu.memory_space<smem>>
    %226 = vector.broadcast %225 : f32 to vector<1x256xf32>
    %227 = arith.mulf %226, %39 : vector<1x256xf32>
    %228 = arith.addf %224, %227 : vector<1x256xf32>
    %c40 = arith.constant 40 : index
    %229 = memref.load %arg1[%c40] : memref<99xf32, #tpu.memory_space<smem>>
    %230 = vector.broadcast %229 : f32 to vector<1x256xf32>
    %231 = arith.mulf %230, %44 : vector<1x256xf32>
    %232 = arith.addf %228, %231 : vector<1x256xf32>
    %c41 = arith.constant 41 : index
    %233 = memref.load %arg1[%c41] : memref<99xf32, #tpu.memory_space<smem>>
    %234 = vector.broadcast %233 : f32 to vector<1x256xf32>
    %235 = arith.mulf %234, %49 : vector<1x256xf32>
    %236 = arith.addf %232, %235 : vector<1x256xf32>
    %c224_i32 = arith.constant 224 : i32
    %237 = tpu.dynamic_rotate %236 by %c224_i32 dim 1 : vector<1x256xf32>, i32 -> vector<1x256xf32>
    %c224_i32_34 = arith.constant 224 : i32
    %238 = vector.broadcast %c224_i32_34 : i32 to vector<1x256xi32>
    %239 = arith.cmpi slt, %17, %238 : vector<1x256xi32>
    %cst_35 = arith.constant 0.000000e+00 : f32
    %240 = vector.broadcast %cst_35 : f32 to vector<1x256xf32>
    %241 = arith.select %239, %237, %240 : vector<1x256xi1>, vector<1x256xf32>
    %242 = arith.addf %209, %241 : vector<1x256xf32>
    %c42 = arith.constant 42 : index
    %243 = memref.load %arg1[%c42] : memref<99xf32, #tpu.memory_space<smem>>
    %244 = vector.broadcast %243 : f32 to vector<1x256xf32>
    %245 = arith.mulf %244, %24 : vector<1x256xf32>
    %c43 = arith.constant 43 : index
    %246 = memref.load %arg1[%c43] : memref<99xf32, #tpu.memory_space<smem>>
    %247 = vector.broadcast %246 : f32 to vector<1x256xf32>
    %248 = arith.mulf %247, %29 : vector<1x256xf32>
    %249 = arith.addf %245, %248 : vector<1x256xf32>
    %c44 = arith.constant 44 : index
    %250 = memref.load %arg1[%c44] : memref<99xf32, #tpu.memory_space<smem>>
    %251 = vector.broadcast %250 : f32 to vector<1x256xf32>
    %252 = arith.mulf %251, %34 : vector<1x256xf32>
    %253 = arith.addf %249, %252 : vector<1x256xf32>
    %c45 = arith.constant 45 : index
    %254 = memref.load %arg1[%c45] : memref<99xf32, #tpu.memory_space<smem>>
    %255 = vector.broadcast %254 : f32 to vector<1x256xf32>
    %256 = arith.mulf %255, %15 : vector<1x256xf32>
    %257 = arith.addf %253, %256 : vector<1x256xf32>
    %c46 = arith.constant 46 : index
    %258 = memref.load %arg1[%c46] : memref<99xf32, #tpu.memory_space<smem>>
    %259 = vector.broadcast %258 : f32 to vector<1x256xf32>
    %260 = arith.mulf %259, %39 : vector<1x256xf32>
    %261 = arith.addf %257, %260 : vector<1x256xf32>
    %c47 = arith.constant 47 : index
    %262 = memref.load %arg1[%c47] : memref<99xf32, #tpu.memory_space<smem>>
    %263 = vector.broadcast %262 : f32 to vector<1x256xf32>
    %264 = arith.mulf %263, %44 : vector<1x256xf32>
    %265 = arith.addf %261, %264 : vector<1x256xf32>
    %c48 = arith.constant 48 : index
    %266 = memref.load %arg1[%c48] : memref<99xf32, #tpu.memory_space<smem>>
    %267 = vector.broadcast %266 : f32 to vector<1x256xf32>
    %268 = arith.mulf %267, %49 : vector<1x256xf32>
    %269 = arith.addf %265, %268 : vector<1x256xf32>
    %c208_i32 = arith.constant 208 : i32
    %270 = tpu.dynamic_rotate %269 by %c208_i32 dim 1 : vector<1x256xf32>, i32 -> vector<1x256xf32>
    %c208_i32_36 = arith.constant 208 : i32
    %271 = vector.broadcast %c208_i32_36 : i32 to vector<1x256xi32>
    %272 = arith.cmpi slt, %17, %271 : vector<1x256xi32>
    %cst_37 = arith.constant 0.000000e+00 : f32
    %273 = vector.broadcast %cst_37 : f32 to vector<1x256xf32>
    %274 = arith.select %272, %270, %273 : vector<1x256xi1>, vector<1x256xf32>
    %275 = arith.addf %242, %274 : vector<1x256xf32>
    %c3_i32_38 = arith.constant 3 : i32
    %276 = tpu.dynamic_rotate %16 by %c3_i32_38 dim 1 : vector<1x256xf32>, i32 -> vector<1x256xf32>
    %c3_i32_39 = arith.constant 3 : i32
    %277 = vector.broadcast %c3_i32_39 : i32 to vector<1x256xi32>
    %278 = arith.cmpi sge, %18, %277 : vector<1x256xi32>
    %cst_40 = arith.constant 0.000000e+00 : f32
    %279 = vector.broadcast %cst_40 : f32 to vector<1x256xf32>
    %280 = arith.select %278, %276, %279 : vector<1x256xi1>, vector<1x256xf32>
    %c2_i32_41 = arith.constant 2 : i32
    %281 = tpu.dynamic_rotate %16 by %c2_i32_41 dim 1 : vector<1x256xf32>, i32 -> vector<1x256xf32>
    %c2_i32_42 = arith.constant 2 : i32
    %282 = vector.broadcast %c2_i32_42 : i32 to vector<1x256xi32>
    %283 = arith.cmpi sge, %18, %282 : vector<1x256xi32>
    %cst_43 = arith.constant 0.000000e+00 : f32
    %284 = vector.broadcast %cst_43 : f32 to vector<1x256xf32>
    %285 = arith.select %283, %281, %284 : vector<1x256xi1>, vector<1x256xf32>
    %c1_i32_44 = arith.constant 1 : i32
    %286 = tpu.dynamic_rotate %16 by %c1_i32_44 dim 1 : vector<1x256xf32>, i32 -> vector<1x256xf32>
    %c1_i32_45 = arith.constant 1 : i32
    %287 = vector.broadcast %c1_i32_45 : i32 to vector<1x256xi32>
    %288 = arith.cmpi sge, %18, %287 : vector<1x256xi32>
    %cst_46 = arith.constant 0.000000e+00 : f32
    %289 = vector.broadcast %cst_46 : f32 to vector<1x256xf32>
    %290 = arith.select %288, %286, %289 : vector<1x256xi1>, vector<1x256xf32>
    %c255_i32_47 = arith.constant 255 : i32
    %291 = tpu.dynamic_rotate %16 by %c255_i32_47 dim 1 : vector<1x256xf32>, i32 -> vector<1x256xf32>
    %c15_i32_48 = arith.constant 15 : i32
    %292 = vector.broadcast %c15_i32_48 : i32 to vector<1x256xi32>
    %293 = arith.cmpi slt, %18, %292 : vector<1x256xi32>
    %cst_49 = arith.constant 0.000000e+00 : f32
    %294 = vector.broadcast %cst_49 : f32 to vector<1x256xf32>
    %295 = arith.select %293, %291, %294 : vector<1x256xi1>, vector<1x256xf32>
    %c254_i32_50 = arith.constant 254 : i32
    %296 = tpu.dynamic_rotate %16 by %c254_i32_50 dim 1 : vector<1x256xf32>, i32 -> vector<1x256xf32>
    %c14_i32_51 = arith.constant 14 : i32
    %297 = vector.broadcast %c14_i32_51 : i32 to vector<1x256xi32>
    %298 = arith.cmpi slt, %18, %297 : vector<1x256xi32>
    %cst_52 = arith.constant 0.000000e+00 : f32
    %299 = vector.broadcast %cst_52 : f32 to vector<1x256xf32>
    %300 = arith.select %298, %296, %299 : vector<1x256xi1>, vector<1x256xf32>
    %c253_i32_53 = arith.constant 253 : i32
    %301 = tpu.dynamic_rotate %16 by %c253_i32_53 dim 1 : vector<1x256xf32>, i32 -> vector<1x256xf32>
    %c13_i32_54 = arith.constant 13 : i32
    %302 = vector.broadcast %c13_i32_54 : i32 to vector<1x256xi32>
    %303 = arith.cmpi slt, %18, %302 : vector<1x256xi32>
    %cst_55 = arith.constant 0.000000e+00 : f32
    %304 = vector.broadcast %cst_55 : f32 to vector<1x256xf32>
    %305 = arith.select %303, %301, %304 : vector<1x256xi1>, vector<1x256xf32>
    %c49 = arith.constant 49 : index
    %306 = memref.load %arg1[%c49] : memref<99xf32, #tpu.memory_space<smem>>
    %307 = vector.broadcast %306 : f32 to vector<1x256xf32>
    %308 = arith.mulf %307, %280 : vector<1x256xf32>
    %c50 = arith.constant 50 : index
    %309 = memref.load %arg1[%c50] : memref<99xf32, #tpu.memory_space<smem>>
    %310 = vector.broadcast %309 : f32 to vector<1x256xf32>
    %311 = arith.mulf %310, %285 : vector<1x256xf32>
    %312 = arith.addf %308, %311 : vector<1x256xf32>
    %c51 = arith.constant 51 : index
    %313 = memref.load %arg1[%c51] : memref<99xf32, #tpu.memory_space<smem>>
    %314 = vector.broadcast %313 : f32 to vector<1x256xf32>
    %315 = arith.mulf %314, %290 : vector<1x256xf32>
    %316 = arith.addf %312, %315 : vector<1x256xf32>
    %c52 = arith.constant 52 : index
    %317 = memref.load %arg1[%c52] : memref<99xf32, #tpu.memory_space<smem>>
    %318 = vector.broadcast %317 : f32 to vector<1x256xf32>
    %319 = arith.mulf %318, %16 : vector<1x256xf32>
    %320 = arith.addf %316, %319 : vector<1x256xf32>
    %c53 = arith.constant 53 : index
    %321 = memref.load %arg1[%c53] : memref<99xf32, #tpu.memory_space<smem>>
    %322 = vector.broadcast %321 : f32 to vector<1x256xf32>
    %323 = arith.mulf %322, %295 : vector<1x256xf32>
    %324 = arith.addf %320, %323 : vector<1x256xf32>
    %c54 = arith.constant 54 : index
    %325 = memref.load %arg1[%c54] : memref<99xf32, #tpu.memory_space<smem>>
    %326 = vector.broadcast %325 : f32 to vector<1x256xf32>
    %327 = arith.mulf %326, %300 : vector<1x256xf32>
    %328 = arith.addf %324, %327 : vector<1x256xf32>
    %c55 = arith.constant 55 : index
    %329 = memref.load %arg1[%c55] : memref<99xf32, #tpu.memory_space<smem>>
    %330 = vector.broadcast %329 : f32 to vector<1x256xf32>
    %331 = arith.mulf %330, %305 : vector<1x256xf32>
    %332 = arith.addf %328, %331 : vector<1x256xf32>
    %c48_i32_56 = arith.constant 48 : i32
    %333 = tpu.dynamic_rotate %332 by %c48_i32_56 dim 1 : vector<1x256xf32>, i32 -> vector<1x256xf32>
    %c48_i32_57 = arith.constant 48 : i32
    %334 = vector.broadcast %c48_i32_57 : i32 to vector<1x256xi32>
    %335 = arith.cmpi sge, %17, %334 : vector<1x256xi32>
    %cst_58 = arith.constant 0.000000e+00 : f32
    %336 = vector.broadcast %cst_58 : f32 to vector<1x256xf32>
    %337 = arith.select %335, %333, %336 : vector<1x256xi1>, vector<1x256xf32>
    %338 = arith.addf %275, %337 : vector<1x256xf32>
    %c56 = arith.constant 56 : index
    %339 = memref.load %arg1[%c56] : memref<99xf32, #tpu.memory_space<smem>>
    %340 = vector.broadcast %339 : f32 to vector<1x256xf32>
    %341 = arith.mulf %340, %280 : vector<1x256xf32>
    %c57 = arith.constant 57 : index
    %342 = memref.load %arg1[%c57] : memref<99xf32, #tpu.memory_space<smem>>
    %343 = vector.broadcast %342 : f32 to vector<1x256xf32>
    %344 = arith.mulf %343, %285 : vector<1x256xf32>
    %345 = arith.addf %341, %344 : vector<1x256xf32>
    %c58 = arith.constant 58 : index
    %346 = memref.load %arg1[%c58] : memref<99xf32, #tpu.memory_space<smem>>
    %347 = vector.broadcast %346 : f32 to vector<1x256xf32>
    %348 = arith.mulf %347, %290 : vector<1x256xf32>
    %349 = arith.addf %345, %348 : vector<1x256xf32>
    %c59 = arith.constant 59 : index
    %350 = memref.load %arg1[%c59] : memref<99xf32, #tpu.memory_space<smem>>
    %351 = vector.broadcast %350 : f32 to vector<1x256xf32>
    %352 = arith.mulf %351, %16 : vector<1x256xf32>
    %353 = arith.addf %349, %352 : vector<1x256xf32>
    %c60 = arith.constant 60 : index
    %354 = memref.load %arg1[%c60] : memref<99xf32, #tpu.memory_space<smem>>
    %355 = vector.broadcast %354 : f32 to vector<1x256xf32>
    %356 = arith.mulf %355, %295 : vector<1x256xf32>
    %357 = arith.addf %353, %356 : vector<1x256xf32>
    %c61 = arith.constant 61 : index
    %358 = memref.load %arg1[%c61] : memref<99xf32, #tpu.memory_space<smem>>
    %359 = vector.broadcast %358 : f32 to vector<1x256xf32>
    %360 = arith.mulf %359, %300 : vector<1x256xf32>
    %361 = arith.addf %357, %360 : vector<1x256xf32>
    %c62 = arith.constant 62 : index
    %362 = memref.load %arg1[%c62] : memref<99xf32, #tpu.memory_space<smem>>
    %363 = vector.broadcast %362 : f32 to vector<1x256xf32>
    %364 = arith.mulf %363, %305 : vector<1x256xf32>
    %365 = arith.addf %361, %364 : vector<1x256xf32>
    %c32_i32_59 = arith.constant 32 : i32
    %366 = tpu.dynamic_rotate %365 by %c32_i32_59 dim 1 : vector<1x256xf32>, i32 -> vector<1x256xf32>
    %c32_i32_60 = arith.constant 32 : i32
    %367 = vector.broadcast %c32_i32_60 : i32 to vector<1x256xi32>
    %368 = arith.cmpi sge, %17, %367 : vector<1x256xi32>
    %cst_61 = arith.constant 0.000000e+00 : f32
    %369 = vector.broadcast %cst_61 : f32 to vector<1x256xf32>
    %370 = arith.select %368, %366, %369 : vector<1x256xi1>, vector<1x256xf32>
    %371 = arith.addf %338, %370 : vector<1x256xf32>
    %c63 = arith.constant 63 : index
    %372 = memref.load %arg1[%c63] : memref<99xf32, #tpu.memory_space<smem>>
    %373 = vector.broadcast %372 : f32 to vector<1x256xf32>
    %374 = arith.mulf %373, %280 : vector<1x256xf32>
    %c64 = arith.constant 64 : index
    %375 = memref.load %arg1[%c64] : memref<99xf32, #tpu.memory_space<smem>>
    %376 = vector.broadcast %375 : f32 to vector<1x256xf32>
    %377 = arith.mulf %376, %285 : vector<1x256xf32>
    %378 = arith.addf %374, %377 : vector<1x256xf32>
    %c65 = arith.constant 65 : index
    %379 = memref.load %arg1[%c65] : memref<99xf32, #tpu.memory_space<smem>>
    %380 = vector.broadcast %379 : f32 to vector<1x256xf32>
    %381 = arith.mulf %380, %290 : vector<1x256xf32>
    %382 = arith.addf %378, %381 : vector<1x256xf32>
    %c66 = arith.constant 66 : index
    %383 = memref.load %arg1[%c66] : memref<99xf32, #tpu.memory_space<smem>>
    %384 = vector.broadcast %383 : f32 to vector<1x256xf32>
    %385 = arith.mulf %384, %16 : vector<1x256xf32>
    %386 = arith.addf %382, %385 : vector<1x256xf32>
    %c67 = arith.constant 67 : index
    %387 = memref.load %arg1[%c67] : memref<99xf32, #tpu.memory_space<smem>>
    %388 = vector.broadcast %387 : f32 to vector<1x256xf32>
    %389 = arith.mulf %388, %295 : vector<1x256xf32>
    %390 = arith.addf %386, %389 : vector<1x256xf32>
    %c68 = arith.constant 68 : index
    %391 = memref.load %arg1[%c68] : memref<99xf32, #tpu.memory_space<smem>>
    %392 = vector.broadcast %391 : f32 to vector<1x256xf32>
    %393 = arith.mulf %392, %300 : vector<1x256xf32>
    %394 = arith.addf %390, %393 : vector<1x256xf32>
    %c69 = arith.constant 69 : index
    %395 = memref.load %arg1[%c69] : memref<99xf32, #tpu.memory_space<smem>>
    %396 = vector.broadcast %395 : f32 to vector<1x256xf32>
    %397 = arith.mulf %396, %305 : vector<1x256xf32>
    %398 = arith.addf %394, %397 : vector<1x256xf32>
    %c16_i32_62 = arith.constant 16 : i32
    %399 = tpu.dynamic_rotate %398 by %c16_i32_62 dim 1 : vector<1x256xf32>, i32 -> vector<1x256xf32>
    %c16_i32_63 = arith.constant 16 : i32
    %400 = vector.broadcast %c16_i32_63 : i32 to vector<1x256xi32>
    %401 = arith.cmpi sge, %17, %400 : vector<1x256xi32>
    %cst_64 = arith.constant 0.000000e+00 : f32
    %402 = vector.broadcast %cst_64 : f32 to vector<1x256xf32>
    %403 = arith.select %401, %399, %402 : vector<1x256xi1>, vector<1x256xf32>
    %404 = arith.addf %371, %403 : vector<1x256xf32>
    %c70 = arith.constant 70 : index
    %405 = memref.load %arg1[%c70] : memref<99xf32, #tpu.memory_space<smem>>
    %406 = vector.broadcast %405 : f32 to vector<1x256xf32>
    %407 = arith.mulf %406, %280 : vector<1x256xf32>
    %c71 = arith.constant 71 : index
    %408 = memref.load %arg1[%c71] : memref<99xf32, #tpu.memory_space<smem>>
    %409 = vector.broadcast %408 : f32 to vector<1x256xf32>
    %410 = arith.mulf %409, %285 : vector<1x256xf32>
    %411 = arith.addf %407, %410 : vector<1x256xf32>
    %c72 = arith.constant 72 : index
    %412 = memref.load %arg1[%c72] : memref<99xf32, #tpu.memory_space<smem>>
    %413 = vector.broadcast %412 : f32 to vector<1x256xf32>
    %414 = arith.mulf %413, %290 : vector<1x256xf32>
    %415 = arith.addf %411, %414 : vector<1x256xf32>
    %c73 = arith.constant 73 : index
    %416 = memref.load %arg1[%c73] : memref<99xf32, #tpu.memory_space<smem>>
    %417 = vector.broadcast %416 : f32 to vector<1x256xf32>
    %418 = arith.mulf %417, %16 : vector<1x256xf32>
    %419 = arith.addf %415, %418 : vector<1x256xf32>
    %c74 = arith.constant 74 : index
    %420 = memref.load %arg1[%c74] : memref<99xf32, #tpu.memory_space<smem>>
    %421 = vector.broadcast %420 : f32 to vector<1x256xf32>
    %422 = arith.mulf %421, %295 : vector<1x256xf32>
    %423 = arith.addf %419, %422 : vector<1x256xf32>
    %c75 = arith.constant 75 : index
    %424 = memref.load %arg1[%c75] : memref<99xf32, #tpu.memory_space<smem>>
    %425 = vector.broadcast %424 : f32 to vector<1x256xf32>
    %426 = arith.mulf %425, %300 : vector<1x256xf32>
    %427 = arith.addf %423, %426 : vector<1x256xf32>
    %c76 = arith.constant 76 : index
    %428 = memref.load %arg1[%c76] : memref<99xf32, #tpu.memory_space<smem>>
    %429 = vector.broadcast %428 : f32 to vector<1x256xf32>
    %430 = arith.mulf %429, %305 : vector<1x256xf32>
    %431 = arith.addf %427, %430 : vector<1x256xf32>
    %432 = arith.addf %404, %431 : vector<1x256xf32>
    %c77 = arith.constant 77 : index
    %433 = memref.load %arg1[%c77] : memref<99xf32, #tpu.memory_space<smem>>
    %434 = vector.broadcast %433 : f32 to vector<1x256xf32>
    %435 = arith.mulf %434, %280 : vector<1x256xf32>
    %c78 = arith.constant 78 : index
    %436 = memref.load %arg1[%c78] : memref<99xf32, #tpu.memory_space<smem>>
    %437 = vector.broadcast %436 : f32 to vector<1x256xf32>
    %438 = arith.mulf %437, %285 : vector<1x256xf32>
    %439 = arith.addf %435, %438 : vector<1x256xf32>
    %c79 = arith.constant 79 : index
    %440 = memref.load %arg1[%c79] : memref<99xf32, #tpu.memory_space<smem>>
    %441 = vector.broadcast %440 : f32 to vector<1x256xf32>
    %442 = arith.mulf %441, %290 : vector<1x256xf32>
    %443 = arith.addf %439, %442 : vector<1x256xf32>
    %c80 = arith.constant 80 : index
    %444 = memref.load %arg1[%c80] : memref<99xf32, #tpu.memory_space<smem>>
    %445 = vector.broadcast %444 : f32 to vector<1x256xf32>
    %446 = arith.mulf %445, %16 : vector<1x256xf32>
    %447 = arith.addf %443, %446 : vector<1x256xf32>
    %c81 = arith.constant 81 : index
    %448 = memref.load %arg1[%c81] : memref<99xf32, #tpu.memory_space<smem>>
    %449 = vector.broadcast %448 : f32 to vector<1x256xf32>
    %450 = arith.mulf %449, %295 : vector<1x256xf32>
    %451 = arith.addf %447, %450 : vector<1x256xf32>
    %c82 = arith.constant 82 : index
    %452 = memref.load %arg1[%c82] : memref<99xf32, #tpu.memory_space<smem>>
    %453 = vector.broadcast %452 : f32 to vector<1x256xf32>
    %454 = arith.mulf %453, %300 : vector<1x256xf32>
    %455 = arith.addf %451, %454 : vector<1x256xf32>
    %c83 = arith.constant 83 : index
    %456 = memref.load %arg1[%c83] : memref<99xf32, #tpu.memory_space<smem>>
    %457 = vector.broadcast %456 : f32 to vector<1x256xf32>
    %458 = arith.mulf %457, %305 : vector<1x256xf32>
    %459 = arith.addf %455, %458 : vector<1x256xf32>
    %c240_i32_65 = arith.constant 240 : i32
    %460 = tpu.dynamic_rotate %459 by %c240_i32_65 dim 1 : vector<1x256xf32>, i32 -> vector<1x256xf32>
    %c240_i32_66 = arith.constant 240 : i32
    %461 = vector.broadcast %c240_i32_66 : i32 to vector<1x256xi32>
    %462 = arith.cmpi slt, %17, %461 : vector<1x256xi32>
    %cst_67 = arith.constant 0.000000e+00 : f32
    %463 = vector.broadcast %cst_67 : f32 to vector<1x256xf32>
    %464 = arith.select %462, %460, %463 : vector<1x256xi1>, vector<1x256xf32>
    %465 = arith.addf %432, %464 : vector<1x256xf32>
    %c84 = arith.constant 84 : index
    %466 = memref.load %arg1[%c84] : memref<99xf32, #tpu.memory_space<smem>>
    %467 = vector.broadcast %466 : f32 to vector<1x256xf32>
    %468 = arith.mulf %467, %280 : vector<1x256xf32>
    %c85 = arith.constant 85 : index
    %469 = memref.load %arg1[%c85] : memref<99xf32, #tpu.memory_space<smem>>
    %470 = vector.broadcast %469 : f32 to vector<1x256xf32>
    %471 = arith.mulf %470, %285 : vector<1x256xf32>
    %472 = arith.addf %468, %471 : vector<1x256xf32>
    %c86 = arith.constant 86 : index
    %473 = memref.load %arg1[%c86] : memref<99xf32, #tpu.memory_space<smem>>
    %474 = vector.broadcast %473 : f32 to vector<1x256xf32>
    %475 = arith.mulf %474, %290 : vector<1x256xf32>
    %476 = arith.addf %472, %475 : vector<1x256xf32>
    %c87 = arith.constant 87 : index
    %477 = memref.load %arg1[%c87] : memref<99xf32, #tpu.memory_space<smem>>
    %478 = vector.broadcast %477 : f32 to vector<1x256xf32>
    %479 = arith.mulf %478, %16 : vector<1x256xf32>
    %480 = arith.addf %476, %479 : vector<1x256xf32>
    %c88 = arith.constant 88 : index
    %481 = memref.load %arg1[%c88] : memref<99xf32, #tpu.memory_space<smem>>
    %482 = vector.broadcast %481 : f32 to vector<1x256xf32>
    %483 = arith.mulf %482, %295 : vector<1x256xf32>
    %484 = arith.addf %480, %483 : vector<1x256xf32>
    %c89 = arith.constant 89 : index
    %485 = memref.load %arg1[%c89] : memref<99xf32, #tpu.memory_space<smem>>
    %486 = vector.broadcast %485 : f32 to vector<1x256xf32>
    %487 = arith.mulf %486, %300 : vector<1x256xf32>
    %488 = arith.addf %484, %487 : vector<1x256xf32>
    %c90 = arith.constant 90 : index
    %489 = memref.load %arg1[%c90] : memref<99xf32, #tpu.memory_space<smem>>
    %490 = vector.broadcast %489 : f32 to vector<1x256xf32>
    %491 = arith.mulf %490, %305 : vector<1x256xf32>
    %492 = arith.addf %488, %491 : vector<1x256xf32>
    %c224_i32_68 = arith.constant 224 : i32
    %493 = tpu.dynamic_rotate %492 by %c224_i32_68 dim 1 : vector<1x256xf32>, i32 -> vector<1x256xf32>
    %c224_i32_69 = arith.constant 224 : i32
    %494 = vector.broadcast %c224_i32_69 : i32 to vector<1x256xi32>
    %495 = arith.cmpi slt, %17, %494 : vector<1x256xi32>
    %cst_70 = arith.constant 0.000000e+00 : f32
    %496 = vector.broadcast %cst_70 : f32 to vector<1x256xf32>
    %497 = arith.select %495, %493, %496 : vector<1x256xi1>, vector<1x256xf32>
    %498 = arith.addf %465, %497 : vector<1x256xf32>
    %c91 = arith.constant 91 : index
    %499 = memref.load %arg1[%c91] : memref<99xf32, #tpu.memory_space<smem>>
    %500 = vector.broadcast %499 : f32 to vector<1x256xf32>
    %501 = arith.mulf %500, %280 : vector<1x256xf32>
    %c92 = arith.constant 92 : index
    %502 = memref.load %arg1[%c92] : memref<99xf32, #tpu.memory_space<smem>>
    %503 = vector.broadcast %502 : f32 to vector<1x256xf32>
    %504 = arith.mulf %503, %285 : vector<1x256xf32>
    %505 = arith.addf %501, %504 : vector<1x256xf32>
    %c93 = arith.constant 93 : index
    %506 = memref.load %arg1[%c93] : memref<99xf32, #tpu.memory_space<smem>>
    %507 = vector.broadcast %506 : f32 to vector<1x256xf32>
    %508 = arith.mulf %507, %290 : vector<1x256xf32>
    %509 = arith.addf %505, %508 : vector<1x256xf32>
    %c94 = arith.constant 94 : index
    %510 = memref.load %arg1[%c94] : memref<99xf32, #tpu.memory_space<smem>>
    %511 = vector.broadcast %510 : f32 to vector<1x256xf32>
    %512 = arith.mulf %511, %16 : vector<1x256xf32>
    %513 = arith.addf %509, %512 : vector<1x256xf32>
    %c95 = arith.constant 95 : index
    %514 = memref.load %arg1[%c95] : memref<99xf32, #tpu.memory_space<smem>>
    %515 = vector.broadcast %514 : f32 to vector<1x256xf32>
    %516 = arith.mulf %515, %295 : vector<1x256xf32>
    %517 = arith.addf %513, %516 : vector<1x256xf32>
    %c96 = arith.constant 96 : index
    %518 = memref.load %arg1[%c96] : memref<99xf32, #tpu.memory_space<smem>>
    %519 = vector.broadcast %518 : f32 to vector<1x256xf32>
    %520 = arith.mulf %519, %300 : vector<1x256xf32>
    %521 = arith.addf %517, %520 : vector<1x256xf32>
    %c97 = arith.constant 97 : index
    %522 = memref.load %arg1[%c97] : memref<99xf32, #tpu.memory_space<smem>>
    %523 = vector.broadcast %522 : f32 to vector<1x256xf32>
    %524 = arith.mulf %523, %305 : vector<1x256xf32>
    %525 = arith.addf %521, %524 : vector<1x256xf32>
    %c208_i32_71 = arith.constant 208 : i32
    %526 = tpu.dynamic_rotate %525 by %c208_i32_71 dim 1 : vector<1x256xf32>, i32 -> vector<1x256xf32>
    %c208_i32_72 = arith.constant 208 : i32
    %527 = vector.broadcast %c208_i32_72 : i32 to vector<1x256xi32>
    %528 = arith.cmpi slt, %17, %527 : vector<1x256xi32>
    %cst_73 = arith.constant 0.000000e+00 : f32
    %529 = vector.broadcast %cst_73 : f32 to vector<1x256xf32>
    %530 = arith.select %528, %526, %529 : vector<1x256xi1>, vector<1x256xf32>
    %531 = arith.addf %498, %530 : vector<1x256xf32>
    %c98 = arith.constant 98 : index
    %532 = memref.load %arg1[%c98] : memref<99xf32, #tpu.memory_space<smem>>
    %533 = vector.broadcast %532 : f32 to vector<1x256xf32>
    %534 = arith.addf %531, %533 : vector<1x256xf32>
    %535 = arith.negf %534 : vector<1x256xf32>
    %536 = math.exp %535 : vector<1x256xf32>
    %cst_74 = arith.constant 1.000000e+00 : f32
    %537 = vector.broadcast %cst_74 : f32 to vector<1x256xf32>
    %538 = arith.addf %537, %536 : vector<1x256xf32>
    %539 = arith.divf %537, %538 : vector<1x256xf32>
    %c0_75 = arith.constant 0 : index
    %c0_76 = arith.constant 0 : index
    %c0_77 = arith.constant 0 : index
    %540 = vector.load %arg3[%c0_75, %c0_76, %c0_77] : memref<1x4x256xf32, #tpu.memory_space<vmem>>, vector<1x4x256xf32>
    %541 = vector.shape_cast %540 : vector<1x4x256xf32> to vector<4x256xf32>
    %542 = vector.broadcast %539 : vector<1x256xf32> to vector<4x256xf32>
    %543 = arith.mulf %542, %541 : vector<4x256xf32>
    %c0_78 = arith.constant 0 : index
    %c0_79 = arith.constant 0 : index
    %c0_80 = arith.constant 0 : index
    %544 = vector.load %arg4[%c0_78, %c0_79, %c0_80] : memref<1x4x256xf32, #tpu.memory_space<vmem>>, vector<1x4x256xf32>
    %545 = vector.shape_cast %544 : vector<1x4x256xf32> to vector<4x256xf32>
    %546 = vector.shape_cast %543 : vector<4x256xf32> to vector<1x4x256xf32>
    tpu.vector_store %arg4[%c0_78, %c0_79, %c0_80], %546 {strides = array<i32>} : memref<1x4x256xf32, #tpu.memory_space<vmem>>, vector<1x4x256xf32>,
    return
  }
  func.func @transform_0(%arg0: i32) -> i32 {
    %c0_i32 = arith.constant 0 : i32
    %c0_i32_0 = arith.constant 0 : i32
    return %c0_i32 : i32
  }
  func.func @transform_1(%arg0: i32) -> (i32, i32) {
    %c0_i32 = arith.constant 0 : i32
    %c0_i32_0 = arith.constant 0 : i32
    %c0_i32_1 = arith.constant 0 : i32
    return %c0_i32, %c0_i32_0 : i32, i32
  }
  func.func @transform_2(%arg0: i32) -> (i32, i32, i32) {
    %c0_i32 = arith.constant 0 : i32
    %c0_i32_0 = arith.constant 0 : i32
    %c0_i32_1 = arith.constant 0 : i32
    return %arg0, %c0_i32, %c0_i32_0 : i32, i32, i32
  }
  func.func @transform_3(%arg0: i32) -> (i32, i32, i32) {
    %c0_i32 = arith.constant 0 : i32
    %c0_i32_0 = arith.constant 0 : i32
    %c0_i32_1 = arith.constant 0 : i32
    return %arg0, %c0_i32, %c0_i32_0 : i32, i32, i32
  }
}

</mosaic_0001>

<llo_original>
// kernel: tpu_custom_call.1
$region0: #{tpu_custom_call.1}
  #allocation0 [shape = 'u32[]', space=smem, size = 0x4, offset = 0x4, fixed_abs, tag = 'smem constant byte address 0x4 - core index']
  #allocation1 [shape = 'u32[144,128]{1,0:T(1,128)}', space=vmem, size = 0x12000, scoped, tag = 'internal scratch']
  %s0 = inlined_call_operand.hbm [shape: f32[99], index: 0, kind: input, shape index: {}]
  %s1 = inlined_call_operand.hbm [shape: s32[2,256], index: 1, kind: input, shape index: {}]
  %s2 = inlined_call_operand.hbm [shape: f32[2,4,256], index: 2, kind: input, shape index: {}]
  %s3 = inlined_call_operand.hbm [shape: f32[2,4,256], index: 3, kind: output, shape index: {}]
  %s4 = sld [smem:[#allocation0]]
  $region57: #{tpu_custom_call.1} parent=0
    _
  %s6 = ssub.s32 1, %s4
  %s7 = scalar_select 0, %s6, %s4
  $region1: #{tpu_custom_call.1} parent=0
    #allocation2 [shape = 'u8[512]{0}', space=smem, size = 0x200, scoped, tag = 'input window, operand 0, single buffered']
    #allocation3 [shape = 's32[2]{0}', space=sflag, size = 0x8, scoped, tag = 'scoped memory for tpu_custom_call.1']
    #allocation4 [shape = 's32[2]{0}', space=sflag, size = 0x8, scoped, tag = 'scoped memory for tpu_custom_call.1']
    #allocation5 [shape = 's32[2]{0}', space=sflag, size = 0x8, scoped, tag = 'scoped memory for tpu_custom_call.1']
    #allocation6 [shape = 'u8[2048]{0}', space=vmem, size = 0x800, scoped, tag = 'input window, operand 1, single buffered']
    #allocation7 [shape = 'u8[8192]{0}', space=vmem, size = 0x2000, scoped, tag = 'input window, operand 2']
    #allocation8 [shape = 's32[2]{0}', space=sflag, size = 0x8, scoped, tag = 'scoped memory for tpu_custom_call.1']
    #allocation9 [shape = 'u8[8192]{0}', space=vmem, size = 0x2000, scoped, tag = 'output window, operand 0']
    %8 = vsyncpa [#allocation5], 0
    %9 = vsyncpa [#allocation3], 0
    %10 = vsyncpa [#allocation8], 0
    %s11 = scalar_lea.sflag [#allocation8], 1
    %12 = vsyncpa %s11, 0
    %13 = vsyncpa [#allocation4], 0
    %s14 = scalar_lea.sflag [#allocation4], 1
    %15 = vsyncpa %s14, 0
    loop: start=0, step=1, limit=4
    $region2: #{tpu_custom_call.1} parent=1 // loop_pre_header
      _
    $region3: #{tpu_custom_call.1} parent=1 // loop_header
      %s17 = sphi 0, %s21
      %p18 = scmp.ge.s32.totalorder %s17, 4
      %s25 = sphi 0, %s25
      %s27 = sphi 0, %s25
      %s28 = sphi 0, %s27
      %s42 = sphi 0, %s28
      %s46 = sphi 0, %s46
      %s48 = sphi 0, %s46
      %s49 = sphi 0, %s48
      %s63 = sphi 0, %s49
      %s69 = sphi 0, %s71
      %s72 = sphi 0, %s69
      %s73 = sphi 0, %s72
      %s89 = sphi 0, %s73
      %s95 = sphi 0, %s97
      %s98 = sphi 0, %s95
      %s99 = sphi 0, %s98
      %s115 = sphi 0, %s99
    $region4: #{tpu_custom_call.1} parent=1 // loop_header_branch
      %20 = sbr.rel (%p18) target = $region8
    $region5: #{tpu_custom_call.1} parent=1 // loop_body
      %s22 = ssub.s32 %s17, 1
      %s23 = ssub.s32 %s17, 2
      %s24 = sadd.s32 %s17, 1
      %s26 = sadd.s32 %s25, 1
      %p29 = scmp.eq.s32.totalorder %s17, 1
      %p30 = scmp.ne.s32.totalorder %s25, %s27
      %p31 = scmp.eq.s32.totalorder %s17, 0
      %p32 = por %p30, %p31
      %p33 = scmp.ne.s32.totalorder %s25, %s27
      %p34 = scmp.eq.s32.totalorder %s22, 1
      %p35 = por %p33, %p34
      %p36 = scmp.ne.s32.totalorder %s27, %s28
      %p37 = scmp.eq.s32.totalorder %s22, 0
      %p38 = por %p36, %p37
      %p39 = scmp.ne.s32.totalorder %s27, %s28
      %p40 = scmp.eq.s32.totalorder %s23, 1
      %p41 = por %p39, %p40
      %p43 = scmp.ne.s32.totalorder %s28, %s42
      %p44 = scmp.eq.s32.totalorder %s23, 0
      %p45 = por %p43, %p44
      %s47 = sadd.s32 %s46, 1
      %p50 = scmp.eq.s32.totalorder %s17, 1
      %p51 = scmp.ne.s32.totalorder %s46, %s48
      %p52 = scmp.eq.s32.totalorder %s17, 0
      %p53 = por %p51, %p52
      %p54 = scmp.ne.s32.totalorder %s46, %s48
      %p55 = scmp.eq.s32.totalorder %s22, 1
      %p56 = por %p54, %p55
      %p57 = scmp.ne.s32.totalorder %s48, %s49
      %p58 = scmp.eq.s32.totalorder %s22, 0
      %p59 = por %p57, %p58
      %p60 = scmp.ne.s32.totalorder %s48, %s49
      %p61 = scmp.eq.s32.totalorder %s23, 1
      %p62 = por %p60, %p61
      %p64 = scmp.ne.s32.totalorder %s49, %s63
      %p65 = scmp.eq.s32.totalorder %s23, 0
      %p66 = por %p64, %p65
      %s67 = ssub.s32 %s17, %s24
      %p68 = scmp.eq.s32.totalorder %s67, 0
      %s70 = sadd.s32 %s69, 1
      %s71 = scalar_select %p68, %s69, %s70
      %p74 = pneg %p68
      %p75 = scmp.eq.s32.totalorder %s17, 1
      %p76 = por %p74, %p75
      %p77 = scmp.ne.s32.totalorder %s69, %s72
      %p78 = scmp.eq.s32.totalorder %s17, 0
      %p79 = por %p77, %p78
      %p80 = scmp.ne.s32.totalorder %s69, %s72
      %p81 = scmp.eq.s32.totalorder %s22, 1
      %p82 = por %p80, %p81
      %p83 = scmp.ne.s32.totalorder %s72, %s73
      %p84 = scmp.eq.s32.totalorder %s22, 0
      %p85 = por %p83, %p84
      %p86 = scmp.ne.s32.totalorder %s72, %s73
      %p87 = scmp.eq.s32.totalorder %s23, 1
      %p88 = por %p86, %p87
      %p90 = scmp.ne.s32.totalorder %s73, %s89
      %p91 = scmp.eq.s32.totalorder %s23, 0
      %p92 = por %p90, %p91
      %s93 = ssub.s32 %s17, %s24
      %p94 = scmp.eq.s32.totalorder %s93, 0
      %s96 = sadd.s32 %s95, 1
      %s97 = scalar_select %p94, %s95, %s96
      %p100 = pneg %p94
      %p101 = scmp.eq.s32.totalorder %s17, 1
      %p102 = por %p100, %p101
      %p103 = scmp.ne.s32.totalorder %s95, %s98
      %p104 = scmp.eq.s32.totalorder %s17, 0
      %p105 = por %p103, %p104
      %p106 = scmp.ne.s32.totalorder %s95, %s98
      %p107 = scmp.eq.s32.totalorder %s22, 1
      %p108 = por %p106, %p107
      %p109 = scmp.ne.s32.totalorder %s98, %s99
      %p110 = scmp.eq.s32.totalorder %s22, 0
      %p111 = por %p109, %p110
      %p112 = scmp.ne.s32.totalorder %s98, %s99
      %p113 = scmp.eq.s32.totalorder %s23, 1
      %p114 = por %p112, %p113
      %p116 = scmp.ne.s32.totalorder %s99, %s115
      %p117 = scmp.eq.s32.totalorder %s23, 0
      %p118 = por %p116, %p117
      %p119 = scmp.le.s32.totalorder 1, %s17
      %p120 = scmp.lt.s32.totalorder %s17, 3
      %p121 = pnand %p119, %p120
      %p122 = pneg %p121
      // Predicated region
      $region9: #{tpu_custom_call.1} parent=5 // pred_check
        _
      $region10: #{tpu_custom_call.1} parent=5 // pred_check_branch
        %124 = sbr.rel (%p121) target = $region12
      $region11: #{tpu_custom_call.1} parent=5 // pred_region
        %s125 = ssub.s32 %s17, 1
        // Predicated region
        $region13: #{tpu_custom_call.1} parent=11 // pred_check
          %p126 = pneg %p38
        $region14: #{tpu_custom_call.1} parent=11 // pred_check_branch
          %128 = sbr.rel (%p126) target = $region16
        $region15: #{tpu_custom_call.1} parent=11 // pred_region
          %s130 = ssub.s32 16, 16
          %131 = vsyncadd [#allocation5], %s130
          %134 = dma.hbm_to_smem %s0, 16, [#allocation2], [#allocation5]
        $region16: #{tpu_custom_call.1} parent=11 // pred_fallthru
          _
        // Predicated region
        $region17: #{tpu_custom_call.1} parent=11 // pred_check
          %p135 = pneg %p59
        $region18: #{tpu_custom_call.1} parent=11 // pred_check_branch
          %137 = sbr.rel (%p135) target = $region20
        $region19: #{tpu_custom_call.1} parent=11 // pred_region
          %s139 = ssub.s32 64, 64
          %140 = vsyncadd [#allocation3], %s139
          %s142 = sshll.u32 [#allocation6], 4
          %s143 = int_to_ptr.vmem [resolvable:$true] %s142
          %145 = dma.hbm_to_vmem [thread:$0]  %s1, 64, %s143, [#allocation3]
        $region20: #{tpu_custom_call.1} parent=11 // pred_fallthru
          _
      $region12: #{tpu_custom_call.1} parent=5 // pred_fallthru
        _
      %p146 = scmp.lt.s32.totalorder %s17, 2
      // Predicated region
      $region21: #{tpu_custom_call.1} parent=5 // pred_check
        %p147 = pneg %p146
      $region22: #{tpu_custom_call.1} parent=5 // pred_check_branch
        %149 = sbr.rel (%p147) target = $region24
      $region23: #{tpu_custom_call.1} parent=5 // pred_region
        // Predicated region
        $region25: #{tpu_custom_call.1} parent=23 // pred_check
          %p150 = pneg %p79
        $region26: #{tpu_custom_call.1} parent=23 // pred_check_branch
          %152 = sbr.rel (%p150) target = $region28
        $region27: #{tpu_custom_call.1} parent=23 // pred_region
          %s153 = sand.u32 %s69, 1
          %s154 = scalar_lea.sflag [#allocation8], %s153
          %s155 = sand.u32 %s69, 1
          %s156 = smul.addr %s155, 8
          %s157 = scalar_lea.vmem [#allocation7], %s156
          %s159 = ssub.s32 128, 128
          %160 = vsyncadd %s154, %s159
          %s161 = smul.addr %s17, 2
          %s162 = smul.addr %s161, 64
          %s163 = scalar_lea.hbm %s2, %s162
          %s165 = sshll.u32 %s157, 4
          %s166 = int_to_ptr.vmem [resolvable:$true] %s165
          %168 = dma.hbm_to_vmem [thread:$0]  %s163, 128, %s166, %s154
        $region28: #{tpu_custom_call.1} parent=23 // pred_fallthru
          _
      $region24: #{tpu_custom_call.1} parent=5 // pred_fallthru
        _
      %p169 = scmp.le.s32.totalorder 1, %s17
      %p170 = scmp.lt.s32.totalorder %s17, 3
      %p171 = pnand %p169, %p170
      %p172 = pneg %p171
      // Predicated region
      $region29: #{tpu_custom_call.1} parent=5 // pred_check
        _
      $region30: #{tpu_custom_call.1} parent=5 // pred_check_branch
        %174 = sbr.rel (%p171) target = $region32
      $region31: #{tpu_custom_call.1} parent=5 // pred_region
        %s175 = ssub.s32 %s17, 1
        // Predicated region
        $region33: #{tpu_custom_call.1} parent=31 // pred_check
          %p176 = pneg %p38
        $region34: #{tpu_custom_call.1} parent=31 // pred_check_branch
          %178 = sbr.rel (%p176) target = $region36
        $region35: #{tpu_custom_call.1} parent=31 // pred_region
          %179 = dma.done [#allocation5], 16
        $region36: #{tpu_custom_call.1} parent=31 // pred_fallthru
          _
        // Predicated region
        $region37: #{tpu_custom_call.1} parent=31 // pred_check
          %p180 = pneg %p59
        $region38: #{tpu_custom_call.1} parent=31 // pred_check_branch
          %182 = sbr.rel (%p180) target = $region40
        $region39: #{tpu_custom_call.1} parent=31 // pred_region
          %183 = dma.done [#allocation3], 64
        $region40: #{tpu_custom_call.1} parent=31 // pred_fallthru
          _
        %s184 = sand.u32 %s72, 1
        %s185 = scalar_lea.sflag [#allocation8], %s184
        %s186 = sand.u32 %s72, 1
        %s187 = smul.addr %s186, 8
        %s188 = scalar_lea.vmem [#allocation7], %s187
        // Predicated region
        $region41: #{tpu_custom_call.1} parent=31 // pred_check
          %p189 = pneg %p85
        $region42: #{tpu_custom_call.1} parent=31 // pred_check_branch
          %191 = sbr.rel (%p189) target = $region44
        $region43: #{tpu_custom_call.1} parent=31 // pred_region
          %192 = dma.done %s185, 128
        $region44: #{tpu_custom_call.1} parent=31 // pred_fallthru
          _
        %193 = sfence
        %p194 = pneg %p38
        %p195 = pneg %p35
        %p196 = pneg %p59
        %p197 = pneg %p56
        %s198 = sand.u32 %s72, 1
        %s199 = scalar_lea.sflag [#allocation8], %s198
        %s200 = sand.u32 %s72, 1
        %s201 = smul.addr %s200, 8
        %s202 = scalar_lea.vmem [#allocation7], %s201
        %p203 = pneg %p85
        %p204 = pneg %p82
        %p205 = pneg %p111
        %p206 = pneg %p108
        %s207 = sand.u32 %s98, 1
        %s208 = scalar_lea.sflag [#allocation4], %s207
        %s209 = sand.u32 %s98, 1
        %s210 = smul.addr %s209, 8
        %s211 = scalar_lea.vmem [#allocation9], %s210
        %v212 = vld [vmem:[%s188] ss:$4 sm:$0x3]
        %s213 = scalar_lea.vmem %s188, 1 [#allocation7]
        %v214 = vld [vmem:[%s213] ss:$4 sm:$0x3]
        %v215 = vmax.f32 %v212, %v214
        %v216 = vadd.f32 %v212, %v214
        %s217 = scalar_lea.vmem %s188, 2 [#allocation7]
        %v218 = vld [vmem:[%s217] ss:$4 sm:$0x3]
        %v219 = vmax.f32 %v215, %v218
        %v220 = vadd.f32 %v216, %v218
        %s221 = scalar_lea.vmem %s188, 3 [#allocation7]
        %v222 = vld [vmem:[%s221] ss:$4 sm:$0x3]
        %v223 = vmax.f32 %v219, %v222
        %v224 = vadd.f32 %v220, %v222
        %v225 = vld [vmem:[#allocation6] ss:$2 sm:$0x3]
        %s226 = scalar_lea.vmem [#allocation6], 1
        %v227 = vld [vmem:[%s226] ss:$2 sm:$0x3]
        %v229 = vlaneseq
        %v230 = vshrl.u32 %v229, 7
        %v231 = vsub.s32 0, %v230
        %v232 = vrot.slane %v223, %v231
        %v233 = vlaneseq
        %v234 = vshrl.u32 %v233, 7
        %v235 = vsub.s32 1, %v234
        %v236 = vrot.slane %v223, %v235
        %239 = vrot.lane.b32.xlu0 %v232, 3
        %v240 = vpop.permute.xlu0 %239
        %241 = vrot.lane.b32.xlu0 %v236, 3
        %v242 = vpop.permute.xlu0 %241
        %v243 = vlaneseq
        %v244 = vand.u32 %v243, 127
        %vm245 = vcmp.lt.s32.totalorder %v244, 3
        %v246 = vsel %vm245, %v240, %v242
        %v247 = vsel %vm245, %v242, %v240
        %vm248 = vcmp.ge.s32.totalorder %v227, 3
        %v251 = vcombine.low %v247, %v246
        %v253 = vunpack.c.l.s4 1966171168
        %v254 = vunpack.c.0.s8 %v253
        %v255 = vlaneseq
        %v256 = vshrl.u32 %v255, 7
        %v257 = vsub.s32 %v254, %v256
        %v258 = vrot.slane %v251, %v257
        %v260 = vunpack.c.l.s4 1966171168
        %v261 = vunpack.c.0.s8 %v260
        %v262 = vlaneseq
        %v263 = vshrl.u32 %v262, 7
        %v264 = vsub.s32 %v261, %v263
        %v265 = vrot.slane %v258, %v264
        %v267 = vsel %vm248, %v265, 0.0
        %268 = vrot.lane.b32.xlu0 %v232, 2
        %v269 = vpop.permute.xlu0 %268
        %270 = vrot.lane.b32.xlu0 %v236, 2
        %v271 = vpop.permute.xlu0 %270
        %vm272 = vcmp.lt.s32.totalorder %v244, 2
        %v273 = vsel %vm272, %v269, %v271
        %v274 = vsel %vm272, %v271, %v269
        %vm275 = vcmp.ge.s32.totalorder %v227, 2
        %v278 = vcombine.low %v274, %v273
        %v280 = vunpack.c.l.s4 1966171168
        %v281 = vunpack.c.0.s8 %v280
        %v282 = vlaneseq
        %v283 = vshrl.u32 %v282, 7
        %v284 = vsub.s32 %v281, %v283
        %v285 = vrot.slane %v278, %v284
        %v287 = vunpack.c.l.s4 1966171168
        %v288 = vunpack.c.0.s8 %v287
        %v289 = vlaneseq
        %v290 = vshrl.u32 %v289, 7
        %v291 = vsub.s32 %v288, %v290
        %v292 = vrot.slane %v285, %v291
        %v294 = vsel %vm275, %v292, 0.0
        %295 = vrot.lane.b32.xlu0 %v232, 1
        %v296 = vpop.permute.xlu0 %295
        %297 = vrot.lane.b32.xlu0 %v236, 1
        %v298 = vpop.permute.xlu0 %297
        %vm299 = vcmp.lt.s32.totalorder %v244, 1
        %v300 = vsel %vm299, %v296, %v298
        %v301 = vsel %vm299, %v298, %v296
        %vm302 = vcmp.ge.s32.totalorder %v227, 1
        %v305 = vcombine.low %v301, %v300
        %v307 = vunpack.c.l.s4 1966171168
        %v308 = vunpack.c.0.s8 %v307
        %v309 = vlaneseq
        %v310 = vshrl.u32 %v309, 7
        %v311 = vsub.s32 %v308, %v310
        %v312 = vrot.slane %v305, %v311
        %v314 = vunpack.c.l.s4 1966171168
        %v315 = vunpack.c.0.s8 %v314
        %v316 = vlaneseq
        %v317 = vshrl.u32 %v316, 7
        %v318 = vsub.s32 %v315, %v317
        %v319 = vrot.slane %v312, %v318
        %v321 = vsel %vm302, %v319, 0.0
        %322 = vrot.lane.b32.xlu0 %v232, 127
        %v323 = vpop.permute.xlu0 %322
        %324 = vrot.lane.b32.xlu0 %v236, 127
        %v325 = vpop.permute.xlu0 %324
        %vm326 = vcmp.lt.s32.totalorder %v244, 127
        %v327 = vsel %vm326, %v323, %v325
        %v328 = vsel %vm326, %v325, %v323
        %vm329 = vcmp.lt.s32.totalorder %v227, 15
        %v332 = vcombine.low %v327, %v328
        %v334 = vunpack.c.l.s4 1966171168
        %v335 = vunpack.c.0.s8 %v334
        %v336 = vlaneseq
        %v337 = vshrl.u32 %v336, 7
        %v338 = vsub.s32 %v335, %v337
        %v339 = vrot.slane %v332, %v338
        %v341 = vunpack.c.l.s4 1966171168
        %v342 = vunpack.c.0.s8 %v341
        %v343 = vlaneseq
        %v344 = vshrl.u32 %v343, 7
        %v345 = vsub.s32 %v342, %v344
        %v346 = vrot.slane %v339, %v345
        %v348 = vsel %vm329, %v346, 0.0
        %349 = vrot.lane.b32.xlu0 %v232, 126
        %v350 = vpop.permute.xlu0 %349
        %351 = vrot.lane.b32.xlu0 %v236, 126
        %v352 = vpop.permute.xlu0 %351
        %vm353 = vcmp.lt.s32.totalorder %v244, 126
        %v354 = vsel %vm353, %v350, %v352
        %v355 = vsel %vm353, %v352, %v350
        %vm356 = vcmp.lt.s32.totalorder %v227, 14
        %v359 = vcombine.low %v354, %v355
        %v361 = vunpack.c.l.s4 1966171168
        %v362 = vunpack.c.0.s8 %v361
        %v363 = vlaneseq
        %v364 = vshrl.u32 %v363, 7
        %v365 = vsub.s32 %v362, %v364
        %v366 = vrot.slane %v359, %v365
        %v368 = vunpack.c.l.s4 1966171168
        %v369 = vunpack.c.0.s8 %v368
        %v370 = vlaneseq
        %v371 = vshrl.u32 %v370, 7
        %v372 = vsub.s32 %v369, %v371
        %v373 = vrot.slane %v366, %v372
        %v375 = vsel %vm356, %v373, 0.0
        %376 = vrot.lane.b32.xlu0 %v232, 125
        %v377 = vpop.permute.xlu0 %376
        %378 = vrot.lane.b32.xlu0 %v236, 125
        %v379 = vpop.permute.xlu0 %378
        %vm380 = vcmp.lt.s32.totalorder %v244, 125
        %v381 = vsel %vm380, %v377, %v379
        %v382 = vsel %vm380, %v379, %v377
        %vm383 = vcmp.lt.s32.totalorder %v227, 13
        %v386 = vcombine.low %v381, %v382
        %v388 = vunpack.c.l.s4 1966171168
        %v389 = vunpack.c.0.s8 %v388
        %v390 = vlaneseq
        %v391 = vshrl.u32 %v390, 7
        %v392 = vsub.s32 %v389, %v391
        %v393 = vrot.slane %v386, %v392
        %v395 = vunpack.c.l.s4 1966171168
        %v396 = vunpack.c.0.s8 %v395
        %v397 = vlaneseq
        %v398 = vshrl.u32 %v397, 7
        %v399 = vsub.s32 %v396, %v398
        %v400 = vrot.slane %v393, %v399
        %v402 = vsel %vm383, %v400, 0.0
        %s403 = sld [smem:[#allocation2]]
        %v404 = vstv %s403
        %v405 = vmul.f32 %v404, %v267
        %s406 = sld [smem:[#allocation2 + $0x1]]
        %v407 = vstv %s406
        %v408 = vmul.f32 %v407, %v294
        %v409 = vadd.f32 %v405, %v408
        %s410 = sld [smem:[#allocation2 + $0x2]]
        %v411 = vstv %s410
        %v412 = vmul.f32 %v411, %v321
        %v413 = vadd.f32 %v409, %v412
        %s414 = sld [smem:[#allocation2 + $0x3]]
        %v415 = vstv %s414
        %v416 = vmul.f32 %v415, %v223
        %v417 = vadd.f32 %v413, %v416
        %s418 = sld [smem:[#allocation2 + $0x4]]
        %v419 = vstv %s418
        %v420 = vmul.f32 %v419, %v348
        %v421 = vadd.f32 %v417, %v420
        %s422 = sld [smem:[#allocation2 + $0x5]]
        %v423 = vstv %s422
        %v424 = vmul.f32 %v423, %v375
        %v425 = vadd.f32 %v421, %v424
        %s426 = sld [smem:[#allocation2 + $0x6]]
        %v427 = vstv %s426
        %v428 = vmul.f32 %v427, %v402
        %v429 = vadd.f32 %v425, %v428
        %v431 = vlaneseq
        %v432 = vshrl.u32 %v431, 7
        %v433 = vsub.s32 0, %v432
        %v434 = vrot.slane %v429, %v433
        %v435 = vlaneseq
        %v436 = vshrl.u32 %v435, 7
        %v437 = vsub.s32 1, %v436
        %v438 = vrot.slane %v429, %v437
        %441 = vrot.lane.b32.xlu0 %v434, 48
        %v442 = vpop.permute.xlu0 %441
        %443 = vrot.lane.b32.xlu0 %v438, 48
        %v444 = vpop.permute.xlu0 %443
        %vm445 = vcmp.lt.s32.totalorder %v244, 48
        %v446 = vsel %vm445, %v442, %v444
        %v447 = vsel %vm445, %v444, %v442
        %vm448 = vcmp.ge.s32.totalorder %v225, 48
        %v451 = vcombine.low %v447, %v446
        %v453 = vunpack.c.l.s4 1966171168
        %v454 = vunpack.c.0.s8 %v453
        %v455 = vlaneseq
        %v456 = vshrl.u32 %v455, 7
        %v457 = vsub.s32 %v454, %v456
        %v458 = vrot.slane %v451, %v457
        %v460 = vunpack.c.l.s4 1966171168
        %v461 = vunpack.c.0.s8 %v460
        %v462 = vlaneseq
        %v463 = vshrl.u32 %v462, 7
        %v464 = vsub.s32 %v461, %v463
        %v465 = vrot.slane %v458, %v464
        %v467 = vsel %vm448, %v465, 0.0
        %v468 = vadd.f32 %v467, 0.0
        %s469 = sld [smem:[#allocation2 + $0x7]]
        %v470 = vstv %s469
        %v471 = vmul.f32 %v470, %v267
        %s472 = sld [smem:[#allocation2 + $0x8]]
        %v473 = vstv %s472
        %v474 = vmul.f32 %v473, %v294
        %v475 = vadd.f32 %v471, %v474
        %s476 = sld [smem:[#allocation2 + $0x9]]
        %v477 = vstv %s476
        %v478 = vmul.f32 %v477, %v321
        %v479 = vadd.f32 %v475, %v478
        %s480 = sld [smem:[#allocation2 + $0xa]]
        %v481 = vstv %s480
        %v482 = vmul.f32 %v481, %v223
        %v483 = vadd.f32 %v479, %v482
        %s484 = sld [smem:[#allocation2 + $0xb]]
        %v485 = vstv %s484
        %v486 = vmul.f32 %v485, %v348
        %v487 = vadd.f32 %v483, %v486
        %s488 = sld [smem:[#allocation2 + $0xc]]
        %v489 = vstv %s488
        %v490 = vmul.f32 %v489, %v375
        %v491 = vadd.f32 %v487, %v490
        %s492 = sld [smem:[#allocation2 + $0xd]]
        %v493 = vstv %s492
        %v494 = vmul.f32 %v493, %v402
        %v495 = vadd.f32 %v491, %v494
        %v497 = vlaneseq
        %v498 = vshrl.u32 %v497, 7
        %v499 = vsub.s32 0, %v498
        %v500 = vrot.slane %v495, %v499
        %v501 = vlaneseq
        %v502 = vshrl.u32 %v501, 7
        %v503 = vsub.s32 1, %v502
        %v504 = vrot.slane %v495, %v503
        %507 = vrot.lane.b32.xlu0 %v500, 32
        %v508 = vpop.permute.xlu0 %507
        %509 = vrot.lane.b32.xlu0 %v504, 32
        %v510 = vpop.permute.xlu0 %509
        %vm511 = vcmp.lt.s32.totalorder %v244, 32
        %v512 = vsel %vm511, %v508, %v510
        %v513 = vsel %vm511, %v510, %v508
        %vm514 = vcmp.ge.s32.totalorder %v225, 32
        %v517 = vcombine.low %v513, %v512
        %v519 = vunpack.c.l.s4 1966171168
        %v520 = vunpack.c.0.s8 %v519
        %v521 = vlaneseq
        %v522 = vshrl.u32 %v521, 7
        %v523 = vsub.s32 %v520, %v522
        %v524 = vrot.slane %v517, %v523
        %v526 = vunpack.c.l.s4 1966171168
        %v527 = vunpack.c.0.s8 %v526
        %v528 = vlaneseq
        %v529 = vshrl.u32 %v528, 7
        %v530 = vsub.s32 %v527, %v529
        %v531 = vrot.slane %v524, %v530
        %v533 = vsel %vm514, %v531, 0.0
        %v534 = vadd.f32 %v468, %v533
        %s535 = sld [smem:[#allocation2 + $0xe]]
        %v536 = vstv %s535
        %v537 = vmul.f32 %v536, %v267
        %s538 = sld [smem:[#allocation2 + $0xf]]
        %v539 = vstv %s538
        %v540 = vmul.f32 %v539, %v294
        %v541 = vadd.f32 %v537, %v540
        %s542 = sld [smem:[#allocation2 + $0x10]]
        %v543 = vstv %s542
        %v544 = vmul.f32 %v543, %v321
        %v545 = vadd.f32 %v541, %v544
        %s546 = sld [smem:[#allocation2 + $0x11]]
        %v547 = vstv %s546
        %v548 = vmul.f32 %v547, %v223
        %v549 = vadd.f32 %v545, %v548
        %s550 = sld [smem:[#allocation2 + $0x12]]
        %v551 = vstv %s550
        %v552 = vmul.f32 %v551, %v348
        %v553 = vadd.f32 %v549, %v552
        %s554 = sld [smem:[#allocation2 + $0x13]]
        %v555 = vstv %s554
        %v556 = vmul.f32 %v555, %v375
        %v557 = vadd.f32 %v553, %v556
        %s558 = sld [smem:[#allocation2 + $0x14]]
        %v559 = vstv %s558
        %v560 = vmul.f32 %v559, %v402
        %v561 = vadd.f32 %v557, %v560
        %v563 = vlaneseq
        %v564 = vshrl.u32 %v563, 7
        %v565 = vsub.s32 0, %v564
        %v566 = vrot.slane %v561, %v565
        %v567 = vlaneseq
        %v568 = vshrl.u32 %v567, 7
        %v569 = vsub.s32 1, %v568
        %v570 = vrot.slane %v561, %v569
        %573 = vrot.lane.b32.xlu0 %v566, 16
        %v574 = vpop.permute.xlu0 %573
        %575 = vrot.lane.b32.xlu0 %v570, 16
        %v576 = vpop.permute.xlu0 %575
        %vm577 = vcmp.lt.s32.totalorder %v244, 16
        %v578 = vsel %vm577, %v574, %v576
        %v579 = vsel %vm577, %v576, %v574
        %vm580 = vcmp.ge.s32.totalorder %v225, 16
        %v583 = vcombine.low %v579, %v578
        %v585 = vunpack.c.l.s4 1966171168
        %v586 = vunpack.c.0.s8 %v585
        %v587 = vlaneseq
        %v588 = vshrl.u32 %v587, 7
        %v589 = vsub.s32 %v586, %v588
        %v590 = vrot.slane %v583, %v589
        %v592 = vunpack.c.l.s4 1966171168
        %v593 = vunpack.c.0.s8 %v592
        %v594 = vlaneseq
        %v595 = vshrl.u32 %v594, 7
        %v596 = vsub.s32 %v593, %v595
        %v597 = vrot.slane %v590, %v596
        %v599 = vsel %vm580, %v597, 0.0
        %v600 = vadd.f32 %v534, %v599
        %s601 = sld [smem:[#allocation2 + $0x15]]
        %v602 = vstv %s601
        %v603 = vmul.f32 %v602, %v267
        %s604 = sld [smem:[#allocation2 + $0x16]]
        %v605 = vstv %s604
        %v606 = vmul.f32 %v605, %v294
        %v607 = vadd.f32 %v603, %v606
        %s608 = sld [smem:[#allocation2 + $0x17]]
        %v609 = vstv %s608
        %v610 = vmul.f32 %v609, %v321
        %v611 = vadd.f32 %v607, %v610
        %s612 = sld [smem:[#allocation2 + $0x18]]
        %v613 = vstv %s612
        %v614 = vmul.f32 %v613, %v223
        %v615 = vadd.f32 %v611, %v614
        %s616 = sld [smem:[#allocation2 + $0x19]]
        %v617 = vstv %s616
        %v618 = vmul.f32 %v617, %v348
        %v619 = vadd.f32 %v615, %v618
        %s620 = sld [smem:[#allocation2 + $0x1a]]
        %v621 = vstv %s620
        %v622 = vmul.f32 %v621, %v375
        %v623 = vadd.f32 %v619, %v622
        %s624 = sld [smem:[#allocation2 + $0x1b]]
        %v625 = vstv %s624
        %v626 = vmul.f32 %v625, %v402
        %v627 = vadd.f32 %v623, %v626
        %v628 = vadd.f32 %v600, %v627
        %s629 = sld [smem:[#allocation2 + $0x1c]]
        %v630 = vstv %s629
        %v631 = vmul.f32 %v630, %v267
        %s632 = sld [smem:[#allocation2 + $0x1d]]
        %v633 = vstv %s632
        %v634 = vmul.f32 %v633, %v294
        %v635 = vadd.f32 %v631, %v634
        %s636 = sld [smem:[#allocation2 + $0x1e]]
        %v637 = vstv %s636
        %v638 = vmul.f32 %v637, %v321
        %v639 = vadd.f32 %v635, %v638
        %s640 = sld [smem:[#allocation2 + $0x1f]]
        %v641 = vstv %s640
        %v642 = vmul.f32 %v641, %v223
        %v643 = vadd.f32 %v639, %v642
        %s644 = sld [smem:[#allocation2 + $0x20]]
        %v645 = vstv %s644
        %v646 = vmul.f32 %v645, %v348
        %v647 = vadd.f32 %v643, %v646
        %s648 = sld [smem:[#allocation2 + $0x21]]
        %v649 = vstv %s648
        %v650 = vmul.f32 %v649, %v375
        %v651 = vadd.f32 %v647, %v650
        %s652 = sld [smem:[#allocation2 + $0x22]]
        %v653 = vstv %s652
        %v654 = vmul.f32 %v653, %v402
        %v655 = vadd.f32 %v651, %v654
        %v657 = vlaneseq
        %v658 = vshrl.u32 %v657, 7
        %v659 = vsub.s32 0, %v658
        %v660 = vrot.slane %v655, %v659
        %v661 = vlaneseq
        %v662 = vshrl.u32 %v661, 7
        %v663 = vsub.s32 1, %v662
        %v664 = vrot.slane %v655, %v663
        %667 = vrot.lane.b32.xlu0 %v660, 112
        %v668 = vpop.permute.xlu0 %667
        %669 = vrot.lane.b32.xlu0 %v664, 112
        %v670 = vpop.permute.xlu0 %669
        %vm671 = vcmp.lt.s32.totalorder %v244, 112
        %v672 = vsel %vm671, %v668, %v670
        %v673 = vsel %vm671, %v670, %v668
        %vm674 = vcmp.lt.s32.totalorder %v225, 240
        %v677 = vcombine.low %v672, %v673
        %v679 = vunpack.c.l.s4 1966171168
        %v680 = vunpack.c.0.s8 %v679
        %v681 = vlaneseq
        %v682 = vshrl.u32 %v681, 7
        %v683 = vsub.s32 %v680, %v682
        %v684 = vrot.slane %v677, %v683
        %v686 = vunpack.c.l.s4 1966171168
        %v687 = vunpack.c.0.s8 %v686
        %v688 = vlaneseq
        %v689 = vshrl.u32 %v688, 7
        %v690 = vsub.s32 %v687, %v689
        %v691 = vrot.slane %v684, %v690
        %v693 = vsel %vm674, %v691, 0.0
        %v694 = vadd.f32 %v628, %v693
        %s695 = sld [smem:[#allocation2 + $0x23]]
        %v696 = vstv %s695
        %v697 = vmul.f32 %v696, %v267
        %s698 = sld [smem:[#allocation2 + $0x24]]
        %v699 = vstv %s698
        %v700 = vmul.f32 %v699, %v294
        %v701 = vadd.f32 %v697, %v700
        %s702 = sld [smem:[#allocation2 + $0x25]]
        %v703 = vstv %s702
        %v704 = vmul.f32 %v703, %v321
        %v705 = vadd.f32 %v701, %v704
        %s706 = sld [smem:[#allocation2 + $0x26]]
        %v707 = vstv %s706
        %v708 = vmul.f32 %v707, %v223
        %v709 = vadd.f32 %v705, %v708
        %s710 = sld [smem:[#allocation2 + $0x27]]
        %v711 = vstv %s710
        %v712 = vmul.f32 %v711, %v348
        %v713 = vadd.f32 %v709, %v712
        %s714 = sld [smem:[#allocation2 + $0x28]]
        %v715 = vstv %s714
        %v716 = vmul.f32 %v715, %v375
        %v717 = vadd.f32 %v713, %v716
        %s718 = sld [smem:[#allocation2 + $0x29]]
        %v719 = vstv %s718
        %v720 = vmul.f32 %v719, %v402
        %v721 = vadd.f32 %v717, %v720
        %v723 = vlaneseq
        %v724 = vshrl.u32 %v723, 7
        %v725 = vsub.s32 0, %v724
        %v726 = vrot.slane %v721, %v725
        %v727 = vlaneseq
        %v728 = vshrl.u32 %v727, 7
        %v729 = vsub.s32 1, %v728
        %v730 = vrot.slane %v721, %v729
        %733 = vrot.lane.b32.xlu0 %v726, 96
        %v734 = vpop.permute.xlu0 %733
        %735 = vrot.lane.b32.xlu0 %v730, 96
        %v736 = vpop.permute.xlu0 %735
        %vm737 = vcmp.lt.s32.totalorder %v244, 96
        %v738 = vsel %vm737, %v734, %v736
        %v739 = vsel %vm737, %v736, %v734
        %vm740 = vcmp.lt.s32.totalorder %v225, 224
        %v743 = vcombine.low %v738, %v739
        %v745 = vunpack.c.l.s4 1966171168
        %v746 = vunpack.c.0.s8 %v745
        %v747 = vlaneseq
        %v748 = vshrl.u32 %v747, 7
        %v749 = vsub.s32 %v746, %v748
        %v750 = vrot.slane %v743, %v749
        %v752 = vunpack.c.l.s4 1966171168
        %v753 = vunpack.c.0.s8 %v752
        %v754 = vlaneseq
        %v755 = vshrl.u32 %v754, 7
        %v756 = vsub.s32 %v753, %v755
        %v757 = vrot.slane %v750, %v756
        %v759 = vsel %vm740, %v757, 0.0
        %v760 = vadd.f32 %v694, %v759
        %s761 = sld [smem:[#allocation2 + $0x2a]]
        %v762 = vstv %s761
        %v763 = vmul.f32 %v762, %v267
        %s764 = sld [smem:[#allocation2 + $0x2b]]
        %v765 = vstv %s764
        %v766 = vmul.f32 %v765, %v294
        %v767 = vadd.f32 %v763, %v766
        %s768 = sld [smem:[#allocation2 + $0x2c]]
        %v769 = vstv %s768
        %v770 = vmul.f32 %v769, %v321
        %v771 = vadd.f32 %v767, %v770
        %s772 = sld [smem:[#allocation2 + $0x2d]]
        %v773 = vstv %s772
        %v774 = vmul.f32 %v773, %v223
        %v775 = vadd.f32 %v771, %v774
        %s776 = sld [smem:[#allocation2 + $0x2e]]
        %v777 = vstv %s776
        %v778 = vmul.f32 %v777, %v348
        %v779 = vadd.f32 %v775, %v778
        %s780 = sld [smem:[#allocation2 + $0x2f]]
        %v781 = vstv %s780
        %v782 = vmul.f32 %v781, %v375
        %v783 = vadd.f32 %v779, %v782
        %s784 = sld [smem:[#allocation2 + $0x30]]
        %v785 = vstv %s784
        %v786 = vmul.f32 %v785, %v402
        %v787 = vadd.f32 %v783, %v786
        %v789 = vlaneseq
        %v790 = vshrl.u32 %v789, 7
        %v791 = vsub.s32 0, %v790
        %v792 = vrot.slane %v787, %v791
        %v793 = vlaneseq
        %v794 = vshrl.u32 %v793, 7
        %v795 = vsub.s32 1, %v794
        %v796 = vrot.slane %v787, %v795
        %799 = vrot.lane.b32.xlu0 %v792, 80
        %v800 = vpop.permute.xlu0 %799
        %801 = vrot.lane.b32.xlu0 %v796, 80
        %v802 = vpop.permute.xlu0 %801
        %vm803 = vcmp.lt.s32.totalorder %v244, 80
        %v804 = vsel %vm803, %v800, %v802
        %v805 = vsel %vm803, %v802, %v800
        %vm806 = vcmp.lt.s32.totalorder %v225, 208
        %v809 = vcombine.low %v804, %v805
        %v811 = vunpack.c.l.s4 1966171168
        %v812 = vunpack.c.0.s8 %v811
        %v813 = vlaneseq
        %v814 = vshrl.u32 %v813, 7
        %v815 = vsub.s32 %v812, %v814
        %v816 = vrot.slane %v809, %v815
        %v818 = vunpack.c.l.s4 1966171168
        %v819 = vunpack.c.0.s8 %v818
        %v820 = vlaneseq
        %v821 = vshrl.u32 %v820, 7
        %v822 = vsub.s32 %v819, %v821
        %v823 = vrot.slane %v816, %v822
        %v825 = vsel %vm806, %v823, 0.0
        %v826 = vadd.f32 %v760, %v825
        %v828 = vlaneseq
        %v829 = vshrl.u32 %v828, 7
        %v830 = vsub.s32 0, %v829
        %v831 = vrot.slane %v224, %v830
        %v832 = vlaneseq
        %v833 = vshrl.u32 %v832, 7
        %v834 = vsub.s32 1, %v833
        %v835 = vrot.slane %v224, %v834
        %838 = vrot.lane.b32.xlu0 %v831, 3
        %v839 = vpop.permute.xlu0 %838
        %840 = vrot.lane.b32.xlu0 %v835, 3
        %v841 = vpop.permute.xlu0 %840
        %v842 = vsel %vm245, %v839, %v841
        %v843 = vsel %vm245, %v841, %v839
        %v846 = vcombine.low %v843, %v842
        %v848 = vunpack.c.l.s4 1966171168
        %v849 = vunpack.c.0.s8 %v848
        %v850 = vlaneseq
        %v851 = vshrl.u32 %v850, 7
        %v852 = vsub.s32 %v849, %v851
        %v853 = vrot.slane %v846, %v852
        %v855 = vunpack.c.l.s4 1966171168
        %v856 = vunpack.c.0.s8 %v855
        %v857 = vlaneseq
        %v858 = vshrl.u32 %v857, 7
        %v859 = vsub.s32 %v856, %v858
        %v860 = vrot.slane %v853, %v859
        %v862 = vsel %vm248, %v860, 0.0
        %863 = vrot.lane.b32.xlu0 %v831, 2
        %v864 = vpop.permute.xlu0 %863
        %865 = vrot.lane.b32.xlu0 %v835, 2
        %v866 = vpop.permute.xlu0 %865
        %v867 = vsel %vm272, %v864, %v866
        %v868 = vsel %vm272, %v866, %v864
        %v871 = vcombine.low %v868, %v867
        %v873 = vunpack.c.l.s4 1966171168
        %v874 = vunpack.c.0.s8 %v873
        %v875 = vlaneseq
        %v876 = vshrl.u32 %v875, 7
        %v877 = vsub.s32 %v874, %v876
        %v878 = vrot.slane %v871, %v877
        %v880 = vunpack.c.l.s4 1966171168
        %v881 = vunpack.c.0.s8 %v880
        %v882 = vlaneseq
        %v883 = vshrl.u32 %v882, 7
        %v884 = vsub.s32 %v881, %v883
        %v885 = vrot.slane %v878, %v884
        %v887 = vsel %vm275, %v885, 0.0
        %888 = vrot.lane.b32.xlu0 %v831, 1
        %v889 = vpop.permute.xlu0 %888
        %890 = vrot.lane.b32.xlu0 %v835, 1
        %v891 = vpop.permute.xlu0 %890
        %v892 = vsel %vm299, %v889, %v891
        %v893 = vsel %vm299, %v891, %v889
        %v896 = vcombine.low %v893, %v892
        %v898 = vunpack.c.l.s4 1966171168
        %v899 = vunpack.c.0.s8 %v898
        %v900 = vlaneseq
        %v901 = vshrl.u32 %v900, 7
        %v902 = vsub.s32 %v899, %v901
        %v903 = vrot.slane %v896, %v902
        %v905 = vunpack.c.l.s4 1966171168
        %v906 = vunpack.c.0.s8 %v905
        %v907 = vlaneseq
        %v908 = vshrl.u32 %v907, 7
        %v909 = vsub.s32 %v906, %v908
        %v910 = vrot.slane %v903, %v909
        %v912 = vsel %vm302, %v910, 0.0
        %913 = vrot.lane.b32.xlu0 %v831, 127
        %v914 = vpop.permute.xlu0 %913
        %915 = vrot.lane.b32.xlu0 %v835, 127
        %v916 = vpop.permute.xlu0 %915
        %v917 = vsel %vm326, %v914, %v916
        %v918 = vsel %vm326, %v916, %v914
        %v921 = vcombine.low %v917, %v918
        %v923 = vunpack.c.l.s4 1966171168
        %v924 = vunpack.c.0.s8 %v923
        %v925 = vlaneseq
        %v926 = vshrl.u32 %v925, 7
        %v927 = vsub.s32 %v924, %v926
        %v928 = vrot.slane %v921, %v927
        %v930 = vunpack.c.l.s4 1966171168
        %v931 = vunpack.c.0.s8 %v930
        %v932 = vlaneseq
        %v933 = vshrl.u32 %v932, 7
        %v934 = vsub.s32 %v931, %v933
        %v935 = vrot.slane %v928, %v934
        %v937 = vsel %vm329, %v935, 0.0
        %938 = vrot.lane.b32.xlu0 %v831, 126
        %v939 = vpop.permute.xlu0 %938
        %940 = vrot.lane.b32.xlu0 %v835, 126
        %v941 = vpop.permute.xlu0 %940
        %v942 = vsel %vm353, %v939, %v941
        %v943 = vsel %vm353, %v941, %v939
        %v946 = vcombine.low %v942, %v943
        %v948 = vunpack.c.l.s4 1966171168
        %v949 = vunpack.c.0.s8 %v948
        %v950 = vlaneseq
        %v951 = vshrl.u32 %v950, 7
        %v952 = vsub.s32 %v949, %v951
        %v953 = vrot.slane %v946, %v952
        %v955 = vunpack.c.l.s4 1966171168
        %v956 = vunpack.c.0.s8 %v955
        %v957 = vlaneseq
        %v958 = vshrl.u32 %v957, 7
        %v959 = vsub.s32 %v956, %v958
        %v960 = vrot.slane %v953, %v959
        %v962 = vsel %vm356, %v960, 0.0
        %963 = vrot.lane.b32.xlu0 %v831, 125
        %v964 = vpop.permute.xlu0 %963
        %965 = vrot.lane.b32.xlu0 %v835, 125
        %v966 = vpop.permute.xlu0 %965
        %v967 = vsel %vm380, %v964, %v966
        %v968 = vsel %vm380, %v966, %v964
        %v971 = vcombine.low %v967, %v968
        %v973 = vunpack.c.l.s4 1966171168
        %v974 = vunpack.c.0.s8 %v973
        %v975 = vlaneseq
        %v976 = vshrl.u32 %v975, 7
        %v977 = vsub.s32 %v974, %v976
        %v978 = vrot.slane %v971, %v977
        %v980 = vunpack.c.l.s4 1966171168
        %v981 = vunpack.c.0.s8 %v980
        %v982 = vlaneseq
        %v983 = vshrl.u32 %v982, 7
        %v984 = vsub.s32 %v981, %v983
        %v985 = vrot.slane %v978, %v984
        %v987 = vsel %vm383, %v985, 0.0
        %s988 = sld [smem:[#allocation2 + $0x31]]
        %v989 = vstv %s988
        %v990 = vmul.f32 %v989, %v862
        %s991 = sld [smem:[#allocation2 + $0x32]]
        %v992 = vstv %s991
        %v993 = vmul.f32 %v992, %v887
        %v994 = vadd.f32 %v990, %v993
        %s995 = sld [smem:[#allocation2 + $0x33]]
        %v996 = vstv %s995
        %v997 = vmul.f32 %v996, %v912
        %v998 = vadd.f32 %v994, %v997
        %s999 = sld [smem:[#allocation2 + $0x34]]
        %v1000 = vstv %s999
        %v1001 = vmul.f32 %v1000, %v224
        %v1002 = vadd.f32 %v998, %v1001
        %s1003 = sld [smem:[#allocation2 + $0x35]]
        %v1004 = vstv %s1003
        %v1005 = vmul.f32 %v1004, %v937
        %v1006 = vadd.f32 %v1002, %v1005
        %s1007 = sld [smem:[#allocation2 + $0x36]]
        %v1008 = vstv %s1007
        %v1009 = vmul.f32 %v1008, %v962
        %v1010 = vadd.f32 %v1006, %v1009
        %s1011 = sld [smem:[#allocation2 + $0x37]]
        %v1012 = vstv %s1011
        %v1013 = vmul.f32 %v1012, %v987
        %v1014 = vadd.f32 %v1010, %v1013
        %v1016 = vlaneseq
        %v1017 = vshrl.u32 %v1016, 7
        %v1018 = vsub.s32 0, %v1017
        %v1019 = vrot.slane %v1014, %v1018
        %v1020 = vlaneseq
        %v1021 = vshrl.u32 %v1020, 7
        %v1022 = vsub.s32 1, %v1021
        %v1023 = vrot.slane %v1014, %v1022
        %1026 = vrot.lane.b32.xlu0 %v1019, 48
        %v1027 = vpop.permute.xlu0 %1026
        %1028 = vrot.lane.b32.xlu0 %v1023, 48
        %v1029 = vpop.permute.xlu0 %1028
        %v1030 = vsel %vm445, %v1027, %v1029
        %v1031 = vsel %vm445, %v1029, %v1027
        %v1034 = vcombine.low %v1031, %v1030
        %v1036 = vunpack.c.l.s4 1966171168
        %v1037 = vunpack.c.0.s8 %v1036
        %v1038 = vlaneseq
        %v1039 = vshrl.u32 %v1038, 7
        %v1040 = vsub.s32 %v1037, %v1039
        %v1041 = vrot.slane %v1034, %v1040
        %v1043 = vunpack.c.l.s4 1966171168
        %v1044 = vunpack.c.0.s8 %v1043
        %v1045 = vlaneseq
        %v1046 = vshrl.u32 %v1045, 7
        %v1047 = vsub.s32 %v1044, %v1046
        %v1048 = vrot.slane %v1041, %v1047
        %v1050 = vsel %vm448, %v1048, 0.0
        %v1051 = vadd.f32 %v826, %v1050
        %s1052 = sld [smem:[#allocation2 + $0x38]]
        %v1053 = vstv %s1052
        %v1054 = vmul.f32 %v1053, %v862
        %s1055 = sld [smem:[#allocation2 + $0x39]]
        %v1056 = vstv %s1055
        %v1057 = vmul.f32 %v1056, %v887
        %v1058 = vadd.f32 %v1054, %v1057
        %s1059 = sld [smem:[#allocation2 + $0x3a]]
        %v1060 = vstv %s1059
        %v1061 = vmul.f32 %v1060, %v912
        %v1062 = vadd.f32 %v1058, %v1061
        %s1063 = sld [smem:[#allocation2 + $0x3b]]
        %v1064 = vstv %s1063
        %v1065 = vmul.f32 %v1064, %v224
        %v1066 = vadd.f32 %v1062, %v1065
        %s1067 = sld [smem:[#allocation2 + $0x3c]]
        %v1068 = vstv %s1067
        %v1069 = vmul.f32 %v1068, %v937
        %v1070 = vadd.f32 %v1066, %v1069
        %s1071 = sld [smem:[#allocation2 + $0x3d]]
        %v1072 = vstv %s1071
        %v1073 = vmul.f32 %v1072, %v962
        %v1074 = vadd.f32 %v1070, %v1073
        %s1075 = sld [smem:[#allocation2 + $0x3e]]
        %v1076 = vstv %s1075
        %v1077 = vmul.f32 %v1076, %v987
        %v1078 = vadd.f32 %v1074, %v1077
        %v1080 = vlaneseq
        %v1081 = vshrl.u32 %v1080, 7
        %v1082 = vsub.s32 0, %v1081
        %v1083 = vrot.slane %v1078, %v1082
        %v1084 = vlaneseq
        %v1085 = vshrl.u32 %v1084, 7
        %v1086 = vsub.s32 1, %v1085
        %v1087 = vrot.slane %v1078, %v1086
        %1090 = vrot.lane.b32.xlu0 %v1083, 32
        %v1091 = vpop.permute.xlu0 %1090
        %1092 = vrot.lane.b32.xlu0 %v1087, 32
        %v1093 = vpop.permute.xlu0 %1092
        %v1094 = vsel %vm511, %v1091, %v1093
        %v1095 = vsel %vm511, %v1093, %v1091
        %v1098 = vcombine.low %v1095, %v1094
        %v1100 = vunpack.c.l.s4 1966171168
        %v1101 = vunpack.c.0.s8 %v1100
        %v1102 = vlaneseq
        %v1103 = vshrl.u32 %v1102, 7
        %v1104 = vsub.s32 %v1101, %v1103
        %v1105 = vrot.slane %v1098, %v1104
        %v1107 = vunpack.c.l.s4 1966171168
        %v1108 = vunpack.c.0.s8 %v1107
        %v1109 = vlaneseq
        %v1110 = vshrl.u32 %v1109, 7
        %v1111 = vsub.s32 %v1108, %v1110
        %v1112 = vrot.slane %v1105, %v1111
        %v1114 = vsel %vm514, %v1112, 0.0
        %v1115 = vadd.f32 %v1051, %v1114
        %s1116 = sld [smem:[#allocation2 + $0x3f]]
        %v1117 = vstv %s1116
        %v1118 = vmul.f32 %v1117, %v862
        %s1119 = sld [smem:[#allocation2 + $0x40]]
        %v1120 = vstv %s1119
        %v1121 = vmul.f32 %v1120, %v887
        %v1122 = vadd.f32 %v1118, %v1121
        %s1123 = sld [smem:[#allocation2 + $0x41]]
        %v1124 = vstv %s1123
        %v1125 = vmul.f32 %v1124, %v912
        %v1126 = vadd.f32 %v1122, %v1125
        %s1127 = sld [smem:[#allocation2 + $0x42]]
        %v1128 = vstv %s1127
        %v1129 = vmul.f32 %v1128, %v224
        %v1130 = vadd.f32 %v1126, %v1129
        %s1131 = sld [smem:[#allocation2 + $0x43]]
        %v1132 = vstv %s1131
        %v1133 = vmul.f32 %v1132, %v937
        %v1134 = vadd.f32 %v1130, %v1133
        %s1135 = sld [smem:[#allocation2 + $0x44]]
        %v1136 = vstv %s1135
        %v1137 = vmul.f32 %v1136, %v962
        %v1138 = vadd.f32 %v1134, %v1137
        %s1139 = sld [smem:[#allocation2 + $0x45]]
        %v1140 = vstv %s1139
        %v1141 = vmul.f32 %v1140, %v987
        %v1142 = vadd.f32 %v1138, %v1141
        %v1144 = vlaneseq
        %v1145 = vshrl.u32 %v1144, 7
        %v1146 = vsub.s32 0, %v1145
        %v1147 = vrot.slane %v1142, %v1146
        %v1148 = vlaneseq
        %v1149 = vshrl.u32 %v1148, 7
        %v1150 = vsub.s32 1, %v1149
        %v1151 = vrot.slane %v1142, %v1150
        %1154 = vrot.lane.b32.xlu0 %v1147, 16
        %v1155 = vpop.permute.xlu0 %1154
        %1156 = vrot.lane.b32.xlu0 %v1151, 16
        %v1157 = vpop.permute.xlu0 %1156
        %v1158 = vsel %vm577, %v1155, %v1157
        %v1159 = vsel %vm577, %v1157, %v1155
        %v1162 = vcombine.low %v1159, %v1158
        %v1164 = vunpack.c.l.s4 1966171168
        %v1165 = vunpack.c.0.s8 %v1164
        %v1166 = vlaneseq
        %v1167 = vshrl.u32 %v1166, 7
        %v1168 = vsub.s32 %v1165, %v1167
        %v1169 = vrot.slane %v1162, %v1168
        %v1171 = vunpack.c.l.s4 1966171168
        %v1172 = vunpack.c.0.s8 %v1171
        %v1173 = vlaneseq
        %v1174 = vshrl.u32 %v1173, 7
        %v1175 = vsub.s32 %v1172, %v1174
        %v1176 = vrot.slane %v1169, %v1175
        %v1178 = vsel %vm580, %v1176, 0.0
        %v1179 = vadd.f32 %v1115, %v1178
        %s1180 = sld [smem:[#allocation2 + $0x46]]
        %v1181 = vstv %s1180
        %v1182 = vmul.f32 %v1181, %v862
        %s1183 = sld [smem:[#allocation2 + $0x47]]
        %v1184 = vstv %s1183
        %v1185 = vmul.f32 %v1184, %v887
        %v1186 = vadd.f32 %v1182, %v1185
        %s1187 = sld [smem:[#allocation2 + $0x48]]
        %v1188 = vstv %s1187
        %v1189 = vmul.f32 %v1188, %v912
        %v1190 = vadd.f32 %v1186, %v1189
        %s1191 = sld [smem:[#allocation2 + $0x49]]
        %v1192 = vstv %s1191
        %v1193 = vmul.f32 %v1192, %v224
        %v1194 = vadd.f32 %v1190, %v1193
        %s1195 = sld [smem:[#allocation2 + $0x4a]]
        %v1196 = vstv %s1195
        %v1197 = vmul.f32 %v1196, %v937
        %v1198 = vadd.f32 %v1194, %v1197
        %s1199 = sld [smem:[#allocation2 + $0x4b]]
        %v1200 = vstv %s1199
        %v1201 = vmul.f32 %v1200, %v962
        %v1202 = vadd.f32 %v1198, %v1201
        %s1203 = sld [smem:[#allocation2 + $0x4c]]
        %v1204 = vstv %s1203
        %v1205 = vmul.f32 %v1204, %v987
        %v1206 = vadd.f32 %v1202, %v1205
        %v1207 = vadd.f32 %v1179, %v1206
        %s1208 = sld [smem:[#allocation2 + $0x4d]]
        %v1209 = vstv %s1208
        %v1210 = vmul.f32 %v1209, %v862
        %s1211 = sld [smem:[#allocation2 + $0x4e]]
        %v1212 = vstv %s1211
        %v1213 = vmul.f32 %v1212, %v887
        %v1214 = vadd.f32 %v1210, %v1213
        %s1215 = sld [smem:[#allocation2 + $0x4f]]
        %v1216 = vstv %s1215
        %v1217 = vmul.f32 %v1216, %v912
        %v1218 = vadd.f32 %v1214, %v1217
        %s1219 = sld [smem:[#allocation2 + $0x50]]
        %v1220 = vstv %s1219
        %v1221 = vmul.f32 %v1220, %v224
        %v1222 = vadd.f32 %v1218, %v1221
        %s1223 = sld [smem:[#allocation2 + $0x51]]
        %v1224 = vstv %s1223
        %v1225 = vmul.f32 %v1224, %v937
        %v1226 = vadd.f32 %v1222, %v1225
        %s1227 = sld [smem:[#allocation2 + $0x52]]
        %v1228 = vstv %s1227
        %v1229 = vmul.f32 %v1228, %v962
        %v1230 = vadd.f32 %v1226, %v1229
        %s1231 = sld [smem:[#allocation2 + $0x53]]
        %v1232 = vstv %s1231
        %v1233 = vmul.f32 %v1232, %v987
        %v1234 = vadd.f32 %v1230, %v1233
        %v1236 = vlaneseq
        %v1237 = vshrl.u32 %v1236, 7
        %v1238 = vsub.s32 0, %v1237
        %v1239 = vrot.slane %v1234, %v1238
        %v1240 = vlaneseq
        %v1241 = vshrl.u32 %v1240, 7
        %v1242 = vsub.s32 1, %v1241
        %v1243 = vrot.slane %v1234, %v1242
        %1246 = vrot.lane.b32.xlu0 %v1239, 112
        %v1247 = vpop.permute.xlu0 %1246
        %1248 = vrot.lane.b32.xlu0 %v1243, 112
        %v1249 = vpop.permute.xlu0 %1248
        %v1250 = vsel %vm671, %v1247, %v1249
        %v1251 = vsel %vm671, %v1249, %v1247
        %v1254 = vcombine.low %v1250, %v1251
        %v1256 = vunpack.c.l.s4 1966171168
        %v1257 = vunpack.c.0.s8 %v1256
        %v1258 = vlaneseq
        %v1259 = vshrl.u32 %v1258, 7
        %v1260 = vsub.s32 %v1257, %v1259
        %v1261 = vrot.slane %v1254, %v1260
        %v1263 = vunpack.c.l.s4 1966171168
        %v1264 = vunpack.c.0.s8 %v1263
        %v1265 = vlaneseq
        %v1266 = vshrl.u32 %v1265, 7
        %v1267 = vsub.s32 %v1264, %v1266
        %v1268 = vrot.slane %v1261, %v1267
        %v1270 = vsel %vm674, %v1268, 0.0
        %v1271 = vadd.f32 %v1207, %v1270
        %s1272 = sld [smem:[#allocation2 + $0x54]]
        %v1273 = vstv %s1272
        %v1274 = vmul.f32 %v1273, %v862
        %s1275 = sld [smem:[#allocation2 + $0x55]]
        %v1276 = vstv %s1275
        %v1277 = vmul.f32 %v1276, %v887
        %v1278 = vadd.f32 %v1274, %v1277
        %s1279 = sld [smem:[#allocation2 + $0x56]]
        %v1280 = vstv %s1279
        %v1281 = vmul.f32 %v1280, %v912
        %v1282 = vadd.f32 %v1278, %v1281
        %s1283 = sld [smem:[#allocation2 + $0x57]]
        %v1284 = vstv %s1283
        %v1285 = vmul.f32 %v1284, %v224
        %v1286 = vadd.f32 %v1282, %v1285
        %s1287 = sld [smem:[#allocation2 + $0x58]]
        %v1288 = vstv %s1287
        %v1289 = vmul.f32 %v1288, %v937
        %v1290 = vadd.f32 %v1286, %v1289
        %s1291 = sld [smem:[#allocation2 + $0x59]]
        %v1292 = vstv %s1291
        %v1293 = vmul.f32 %v1292, %v962
        %v1294 = vadd.f32 %v1290, %v1293
        %s1295 = sld [smem:[#allocation2 + $0x5a]]
        %v1296 = vstv %s1295
        %v1297 = vmul.f32 %v1296, %v987
        %v1298 = vadd.f32 %v1294, %v1297
        %v1300 = vlaneseq
        %v1301 = vshrl.u32 %v1300, 7
        %v1302 = vsub.s32 0, %v1301
        %v1303 = vrot.slane %v1298, %v1302
        %v1304 = vlaneseq
        %v1305 = vshrl.u32 %v1304, 7
        %v1306 = vsub.s32 1, %v1305
        %v1307 = vrot.slane %v1298, %v1306
        %1310 = vrot.lane.b32.xlu0 %v1303, 96
        %v1311 = vpop.permute.xlu0 %1310
        %1312 = vrot.lane.b32.xlu0 %v1307, 96
        %v1313 = vpop.permute.xlu0 %1312
        %v1314 = vsel %vm737, %v1311, %v1313
        %v1315 = vsel %vm737, %v1313, %v1311
        %v1318 = vcombine.low %v1314, %v1315
        %v1320 = vunpack.c.l.s4 1966171168
        %v1321 = vunpack.c.0.s8 %v1320
        %v1322 = vlaneseq
        %v1323 = vshrl.u32 %v1322, 7
        %v1324 = vsub.s32 %v1321, %v1323
        %v1325 = vrot.slane %v1318, %v1324
        %v1327 = vunpack.c.l.s4 1966171168
        %v1328 = vunpack.c.0.s8 %v1327
        %v1329 = vlaneseq
        %v1330 = vshrl.u32 %v1329, 7
        %v1331 = vsub.s32 %v1328, %v1330
        %v1332 = vrot.slane %v1325, %v1331
        %v1334 = vsel %vm740, %v1332, 0.0
        %v1335 = vadd.f32 %v1271, %v1334
        %s1336 = sld [smem:[#allocation2 + $0x5b]]
        %v1337 = vstv %s1336
        %v1338 = vmul.f32 %v1337, %v862
        %s1339 = sld [smem:[#allocation2 + $0x5c]]
        %v1340 = vstv %s1339
        %v1341 = vmul.f32 %v1340, %v887
        %v1342 = vadd.f32 %v1338, %v1341
        %s1343 = sld [smem:[#allocation2 + $0x5d]]
        %v1344 = vstv %s1343
        %v1345 = vmul.f32 %v1344, %v912
        %v1346 = vadd.f32 %v1342, %v1345
        %s1347 = sld [smem:[#allocation2 + $0x5e]]
        %v1348 = vstv %s1347
        %v1349 = vmul.f32 %v1348, %v224
        %v1350 = vadd.f32 %v1346, %v1349
        %s1351 = sld [smem:[#allocation2 + $0x5f]]
        %v1352 = vstv %s1351
        %v1353 = vmul.f32 %v1352, %v937
        %v1354 = vadd.f32 %v1350, %v1353
        %s1355 = sld [smem:[#allocation2 + $0x60]]
        %v1356 = vstv %s1355
        %v1357 = vmul.f32 %v1356, %v962
        %v1358 = vadd.f32 %v1354, %v1357
        %s1359 = sld [smem:[#allocation2 + $0x61]]
        %v1360 = vstv %s1359
        %v1361 = vmul.f32 %v1360, %v987
        %v1362 = vadd.f32 %v1358, %v1361
        %v1364 = vlaneseq
        %v1365 = vshrl.u32 %v1364, 7
        %v1366 = vsub.s32 0, %v1365
        %v1367 = vrot.slane %v1362, %v1366
        %v1368 = vlaneseq
        %v1369 = vshrl.u32 %v1368, 7
        %v1370 = vsub.s32 1, %v1369
        %v1371 = vrot.slane %v1362, %v1370
        %1374 = vrot.lane.b32.xlu0 %v1367, 80
        %v1375 = vpop.permute.xlu0 %1374
        %1376 = vrot.lane.b32.xlu0 %v1371, 80
        %v1377 = vpop.permute.xlu0 %1376
        %v1378 = vsel %vm803, %v1375, %v1377
        %v1379 = vsel %vm803, %v1377, %v1375
        %v1382 = vcombine.low %v1378, %v1379
        %v1384 = vunpack.c.l.s4 1966171168
        %v1385 = vunpack.c.0.s8 %v1384
        %v1386 = vlaneseq
        %v1387 = vshrl.u32 %v1386, 7
        %v1388 = vsub.s32 %v1385, %v1387
        %v1389 = vrot.slane %v1382, %v1388
        %v1391 = vunpack.c.l.s4 1966171168
        %v1392 = vunpack.c.0.s8 %v1391
        %v1393 = vlaneseq
        %v1394 = vshrl.u32 %v1393, 7
        %v1395 = vsub.s32 %v1392, %v1394
        %v1396 = vrot.slane %v1389, %v1395
        %v1398 = vsel %vm806, %v1396, 0.0
        %v1399 = vadd.f32 %v1335, %v1398
        %s1400 = sld [smem:[#allocation2 + $0x62]]
        %v1401 = vstv %s1400
        %v1402 = vadd.f32 %v1399, %v1401
        %v1403 = vxor.u32 %v1402, 2147483648
        %v1404 = vmul.f32 %v1403, 1.442695
        %v1405 = vpow.pop %v1404
        %v1406 = vadd.f32 %v1405, 1.0
        %v1407 = vrcp.pop %v1406
        %v1408 = vmul.f32 1.0, %v1407
        %v1409 = vld [vmem:[%s188] sm:$0xff]
        %v1411 = vlaneseq
        %v1412 = vshrl.u32 %v1411, 7
        %v1413 = vsub.s32 0, %v1412
        %v1414 = vrot.slane %v1408, %v1413
        %v1415 = vlaneseq
        %v1416 = vshrl.u32 %v1415, 7
        %v1417 = vsub.s32 1, %v1416
        %v1418 = vrot.slane %v1408, %v1417
        %v1422 = vcombine.high %v1409, %v1409
        %v1424 = vmul.f32 %v1414, %v1409
        %v1425 = vmul.f32 %v1418, %v1422
        %v1428 = vcombine.low %v1424, %v1425
        %1430 = vst [vmem:[%s211] sm:$0xff] %v1428
        %s1431 = sand.u32 %s98, 1
        %s1432 = scalar_lea.sflag [#allocation4], %s1431
        %s1433 = sand.u32 %s98, 1
        %s1434 = smul.addr %s1433, 8
        %s1435 = scalar_lea.vmem [#allocation9], %s1434
        // Predicated region
        $region45: #{tpu_custom_call.1} parent=31 // pred_check
          %p1436 = pneg %p108
        $region46: #{tpu_custom_call.1} parent=31 // pred_check_branch
          %1438 = sbr.rel (%p1436) target = $region48
        $region47: #{tpu_custom_call.1} parent=31 // pred_region
          %s1440 = ssub.s32 128, 128
          %1441 = vsyncadd %s1432, %s1440
          %s1442 = smul.addr %s22, 2
          %s1443 = smul.addr %s1442, 64
          %s1444 = scalar_lea.hbm %s3, %s1443
          %s1446 = sshll.u32 %s1435, 4
          %s1447 = int_to_ptr.vmem [resolvable:$true] %s1446
          %1449 = dma.vmem_to_hbm [thread:$0]  %s1447, 128, %s1444, %s1432
        $region48: #{tpu_custom_call.1} parent=31 // pred_fallthru
          _
      $region32: #{tpu_custom_call.1} parent=5 // pred_fallthru
        _
      %p1450 = scmp.le.s32.totalorder 2, %s17
      // Predicated region
      $region49: #{tpu_custom_call.1} parent=5 // pred_check
        %p1451 = pneg %p1450
      $region50: #{tpu_custom_call.1} parent=5 // pred_check_branch
        %1453 = sbr.rel (%p1451) target = $region52
      $region51: #{tpu_custom_call.1} parent=5 // pred_region
        %s1454 = ssub.s32 %s17, 2
        // Predicated region
        $region53: #{tpu_custom_call.1} parent=51 // pred_check
          %p1455 = pneg %p114
        $region54: #{tpu_custom_call.1} parent=51 // pred_check_branch
          %1457 = sbr.rel (%p1455) target = $region56
        $region55: #{tpu_custom_call.1} parent=51 // pred_region
          %s1458 = sand.u32 %s99, 1
          %s1459 = scalar_lea.sflag [#allocation4], %s1458
          %s1460 = sand.u32 %s99, 1
          %s1461 = smul.addr %s1460, 8
          %s1462 = scalar_lea.vmem [#allocation9], %s1461
          %1463 = dma.done %s1459, 128
        $region56: #{tpu_custom_call.1} parent=51 // pred_fallthru
          _
      $region52: #{tpu_custom_call.1} parent=5 // pred_fallthru
        _
    $region6: #{tpu_custom_call.1} parent=1 // loop_footer
      %s21 = sadd.s32 1, %s17
    $region7: #{tpu_custom_call.1} parent=1 // loop_footer_branch
      %16 = sbr.rel target = $region3
    $region8: #{tpu_custom_call.1} parent=1 // loop_exit
      _
    %1464 = vsyncpa [#allocation3], 1
    %s1465 = scalar_lea.sflag [#allocation3], 1
    %1466 = vsyncpa %s1465, 1
    %1467 = vsyncpa [#allocation8], 1
    %s1468 = scalar_lea.sflag [#allocation8], 1
    %1469 = vsyncpa %s1468, 1
    %1470 = vsyncpa [#allocation4], 1
    %s1471 = scalar_lea.sflag [#allocation4], 1
    %1472 = vsyncpa %s1471, 1
    %1473 = vsyncpa [#allocation5], 1
    %s1474 = scalar_lea.sflag [#allocation5], 1
    %1475 = vsyncpa %s1474, 1

</llo_original>
